<compile_context>
chip_gen: v7x
topology: tpu7x:2x2x1
jax: 0.10.0
libtpu: 0.0.40
codegen_flags: <defaults>
</compile_context>

<pallas_src>
import functools

import jax
import jax.numpy as jnp
from jax import lax
from jax.experimental import pallas as pl
from jax.experimental.pallas import tpu as pltpu


def _round_up(x, m):
    return ((x + m - 1) // m) * m


def _lstm_recurrence_kernel(max_len_ref,        # scalar prefetch (SMEM): [1] int32
                            len_ref,            # (B_SHARD, 1) int32
                            gates_in_ref,       # (T_BLK, B_SHARD, 4*Hp) f32 (x@Wih^T + b)
                            whh_ref,            # (Hp, 4*Hp) recurrent weights
                            y_ref,              # (T_BLK, B_SHARD, Hp) f32 output
                            h_ref, c_ref,       # (B_SHARD, Hp) f32 scratch state
                            *, t_blk, hp):
    """One time-block of the LSTM recurrence. Grid: (batch_shard, time_block)."""
    tb = pl.program_id(1)
    block_start = tb * t_blk

    @pl.when(tb == 0)
    def _init_state():
        h_ref[...] = jnp.zeros_like(h_ref)
        c_ref[...] = jnp.zeros_like(c_ref)

    max_len = max_len_ref[0]

    @pl.when(block_start >= max_len)
    def _dead_block():
        # All timesteps in this block are past every sequence's length:
        # outputs are zero, state is untouched (lane-dense unmasked store only).
        y_ref[...] = jnp.zeros_like(y_ref)

    @pl.when(block_start < max_len)
    def _live_block():
        lengths = len_ref[...]                         # (B_SHARD, 1) int32
        whh = whh_ref[...]                             # (Hp, 4*Hp)

        def step(t, carry):
            h, c = carry
            # Serial critical path: one small matmul + fused activations.
            gates = gates_in_ref[t] + jnp.dot(
                h.astype(whh.dtype), whh, preferred_element_type=jnp.float32)
            # Packed gate order is (i, f, o, g): sigmoid over one contiguous,
            # lane-aligned [0:3*Hp] region; tanh over the last Hp lanes.
            sig = jax.nn.sigmoid(gates[:, :3 * hp])
            i_g = sig[:, 0 * hp:1 * hp]
            f_g = sig[:, 1 * hp:2 * hp]
            o_g = sig[:, 2 * hp:3 * hp]
            g_g = jnp.tanh(gates[:, 3 * hp:4 * hp])

            c_new = f_g * c + i_g * g_g
            h_new = o_g * jnp.tanh(c_new)

            valid = lengths > (block_start + t)        # (B_SHARD, 1) bool
            # pack/pad semantics: freeze state and zero outputs past seq length.
            h = jnp.where(valid, h_new, h)
            c = jnp.where(valid, c_new, c)
            y_ref[t] = jnp.where(valid, h_new, 0.0).astype(y_ref.dtype)
            return h, c

        h_fin, c_fin = lax.fori_loop(
            0, t_blk, step, (h_ref[...], c_ref[...]), unroll=True)
        h_ref[...] = h_fin
        c_ref[...] = c_fin


def code_expression_tokens_sequence_encoder(token_seqs_embeddings,
                                            sequences_lengths,
                                            params,
                                            *,
                                            time_block=None,
                                            recurrent_weights_dtype=jnp.float32):
    """Pallas forward. token_seqs_embeddings: [B, S, D] f32, lengths: [B] int."""
    wih, whh, bih, bhh = params
    B, S, D = token_seqs_embeddings.shape
    H = whh.shape[1]
    assert D == H, "token_encoding_dim is both input and hidden dim"

    hp = _round_up(H, 128)                       # lane-dense hidden dim
    n_b_shards = 2 if B > 8 else 1               # megacore batch sharding (v7x)
    bp = _round_up(B, 8 * n_b_shards)            # sublane-aligned batch
    b_shard = bp // n_b_shards
    if time_block is None:
        time_block = min(_round_up(S, 8), 32)    # amortize grid overhead
    sp = _round_up(S, time_block)

    # Gate packing: PyTorch order (i, f, g, o) -> packed (i, f, o, g), each gate
    # padded to hp columns (zero weights/bias => padded hidden units stay exactly 0).
    order = (0, 1, 3, 2)

    def pack_w_t(w):                              # (4H, H) -> (hp, 4*hp), transposed
        out = jnp.zeros((hp, 4 * hp), jnp.float32)
        for k, src in enumerate(order):
            out = out.at[:H, k * hp:k * hp + H].set(
                w[src * H:(src + 1) * H, :].astype(jnp.float32).T)
        return out

    def pack_b(b):                                # (4H,) -> (4*hp,)
        out = jnp.zeros((4 * hp,), jnp.float32)
        for k, src in enumerate(order):
            out = out.at[k * hp:k * hp + H].set(
                b[src * H:(src + 1) * H].astype(jnp.float32))
        return out

    wih_t_p = pack_w_t(wih)                                   # (hp, 4*hp) f32
    whh_t_p = pack_w_t(whh).astype(recurrent_weights_dtype)   # (hp, 4*hp)
    bias_p = (pack_b(bih) + pack_b(bhh)).reshape(1, 1, 4 * hp)

    # Time-major, padded input: [sp, bp, hp].
    x = jnp.transpose(token_seqs_embeddings.astype(jnp.float32), (1, 0, 2))
    x = jnp.pad(x, ((0, sp - S), (0, bp - B), (0, hp - D)))

    # Hoisted input projection: one big, fully-parallel matmul for ALL timesteps
    # (streamed into the recurrent kernel block-by-block, so it never has to be
    #  VMEM-resident in full — safe for v7x's 64 MiB VMEM).
    gates_in = jnp.einsum('sbd,dg->sbg', x, wih_t_p,
                          preferred_element_type=jnp.float32) + bias_p

    lengths_p = jnp.zeros((bp, 1), jnp.int32).at[:B, 0].set(
        sequences_lengths.astype(jnp.int32))
    max_len = jnp.max(lengths_p).reshape(1)      # scalar-prefetch: skip dead blocks

    grid = (n_b_shards, sp // time_block)
    kernel = functools.partial(_lstm_recurrence_kernel, t_blk=time_block, hp=hp)

    y = pl.pallas_call(
        kernel,
        out_shape=jax.ShapeDtypeStruct((sp, bp, hp), jnp.float32),
        grid_spec=pltpu.PrefetchScalarGridSpec(
            num_scalar_prefetch=1,
            grid=grid,
            in_specs=[
                pl.BlockSpec((b_shard, 1), lambda bs, tb, ml: (bs, 0)),
                pl.BlockSpec((time_block, b_shard, 4 * hp),
                             lambda bs, tb, ml: (tb, bs, 0)),
                pl.BlockSpec((hp, 4 * hp), lambda bs, tb, ml: (0, 0)),
            ],
            out_specs=pl.BlockSpec((time_block, b_shard, hp),
                                   lambda bs, tb, ml: (tb, bs, 0)),
            scratch_shapes=[pltpu.VMEM((b_shard, hp), jnp.float32),   # h state
                            pltpu.VMEM((b_shard, hp), jnp.float32)],  # c state
        ),
        compiler_params=pltpu.CompilerParams(
            # batch shards are independent (megacore); time is a recurrence.
            dimension_semantics=("parallel", "arbitrary")),
    )(max_len, lengths_p, gates_in, whh_t_p)

    y = y[:S, :B, :H]                                   # unpad
    return jnp.transpose(y, (1, 0, 2)).astype(token_seqs_embeddings.dtype)


def _reference_lstm(token_seqs_embeddings, sequences_lengths, params):
    """Pure-JAX reference for correctness checking."""
    wih, whh, bih, bhh = params
    B, S, D = token_seqs_embeddings.shape
    H = whh.shape[1]

    def step(carry, inp):
        h, c = carry
        xt, t = inp
        gates = xt @ wih.T + h @ whh.T + bih + bhh
        i_g, f_g, g_g, o_g = jnp.split(gates, 4, axis=-1)
        i_g, f_g, o_g = (jax.nn.sigmoid(i_g), jax.nn.sigmoid(f_g),
                         jax.nn.sigmoid(o_g))
        g_g = jnp.tanh(g_g)
        c_new = f_g * c + i_g * g_g
        h_new = o_g * jnp.tanh(c_new)
        valid = (sequences_lengths > t)[:, None]
        h = jnp.where(valid, h_new, h)
        c = jnp.where(valid, c_new, c)
        y = jnp.where(valid, h_new, 0.0)
        return (h, c), y

    x_sbd = jnp.transpose(token_seqs_embeddings, (1, 0, 2))
    init = (jnp.zeros((B, H), jnp.float32), jnp.zeros((B, H), jnp.float32))
    _, y = jax.lax.scan(step, init, (x_sbd, jnp.arange(S)))
    return jnp.transpose(y, (1, 0, 2))


def _init_params(key, D, H):
    """Deterministic PyTorch-style LSTM init: U(-1/sqrt(H), 1/sqrt(H))."""
    k1, k2, k3, k4 = jax.random.split(key, 4)
    bound = 1.0 / jnp.sqrt(jnp.float32(H))
    wih = jax.random.uniform(k1, (4 * H, D), jnp.float32, -bound, bound)
    whh = jax.random.uniform(k2, (4 * H, H), jnp.float32, -bound, bound)
    bih = jax.random.uniform(k3, (4 * H,), jnp.float32, -bound, bound)
    bhh = jax.random.uniform(k4, (4 * H,), jnp.float32, -bound, bound)
    return wih, whh, bih, bhh


if __name__ == "__main__":
    B, S, D = 2, 8, 32              # batch, max seq len, token_encoding_dim
    key = jax.random.PRNGKey(0)
    k_x, k_p = jax.random.split(key)

    token_seqs_embeddings = jax.random.normal(k_x, (B, S, D), jnp.float32)
    sequences_lengths = jnp.array([8, 5], dtype=jnp.int32)
    params = _init_params(k_p, D, D)

    # f32 path (default; v5e-safe).
    out = jax.jit(functools.partial(code_expression_tokens_sequence_encoder,
                                    params=params))(
        token_seqs_embeddings, sequences_lengths)
    out = jax.block_until_ready(out)

    ref = _reference_lstm(token_seqs_embeddings, sequences_lengths, params)
    assert out.shape == token_seqs_embeddings.shape
    assert jnp.allclose(out, ref, atol=1e-5, rtol=1e-5), float(
        jnp.max(jnp.abs(out - ref)))

    # bf16 recurrent weights (v6e / v7x option); looser tolerance.
    out_bf16 = jax.jit(functools.partial(
        code_expression_tokens_sequence_encoder, params=params,
        recurrent_weights_dtype=jnp.bfloat16))(
        token_seqs_embeddings, sequences_lengths)
    out_bf16 = jax.block_until_ready(out_bf16)
    assert jnp.allclose(out_bf16, ref, atol=5e-2, rtol=5e-2), float(
        jnp.max(jnp.abs(out_bf16 - ref)))

    print("KERNEL_OK")
</pallas_src>

<mosaic_0001>
module attributes {stable_mosaic.version = 11 : i64} {
  func.func @_lstm_recurrence_kernel(%arg0: i32, %arg1: i32, %arg2: memref<1xi32, #tpu.memory_space<smem>>, %arg3: memref<8x1xi32, #tpu.memory_space<vmem>>, %arg4: memref<8x8x512xf32, #tpu.memory_space<vmem>>, %arg5: memref<128x512xf32, #tpu.memory_space<vmem>>, %arg6: memref<8x8x128xf32, #tpu.memory_space<vmem>>, %arg7: memref<8x128xf32, #tpu.memory_space<vmem>>, %arg8: memref<8x128xf32, #tpu.memory_space<vmem>>) attributes {dimension_semantics = [#tpu.dimension_semantics<parallel>, #tpu.dimension_semantics<arbitrary>], iteration_bounds = array<i64: 1, 1>, scalar_prefetch = 1 : i64, scratch_operands = 2 : i64, tpu.core_type = #tpu.core_type<tc>, window_params = [{transform_indices = @transform_0, window_bounds = array<i64: 8, 1>}, {transform_indices = @transform_1, window_bounds = array<i64: 8, 8, 512>}, {pipeline_mode = #tpu.pipeline_mode<synchronous>, transform_indices = @transform_2, window_bounds = array<i64: 128, 512>}, {transform_indices = @transform_3, window_bounds = array<i64: 8, 8, 128>}]} {
    %c8_i32 = arith.constant 8 : i32
    %0 = arith.muli %arg1, %c8_i32 : i32
    %c0_i32 = arith.constant 0 : i32
    %1 = arith.cmpi eq, %arg1, %c0_i32 : i32
    %2 = arith.extui %1 : i1 to i32
    %c0_i32_0 = arith.constant 0 : i32
    %3 = arith.cmpi ne, %2, %c0_i32_0 : i32
    scf.if %3 {
      %cst = arith.constant 0.000000e+00 : f32
      %11 = vector.broadcast %cst : f32 to vector<8x128xf32>
      %c0_3 = arith.constant 0 : index
      %c0_4 = arith.constant 0 : index
      %12 = vector.load %arg7[%c0_3, %c0_4] : memref<8x128xf32, #tpu.memory_space<vmem>>, vector<8x128xf32>
      tpu.vector_store %arg7[%c0_3, %c0_4], %11 {strides = array<i32>} : memref<8x128xf32, #tpu.memory_space<vmem>>, vector<8x128xf32>,
      %cst_5 = arith.constant 0.000000e+00 : f32
      %13 = vector.broadcast %cst_5 : f32 to vector<8x128xf32>
      %c0_6 = arith.constant 0 : index
      %c0_7 = arith.constant 0 : index
      %14 = vector.load %arg8[%c0_6, %c0_7] : memref<8x128xf32, #tpu.memory_space<vmem>>, vector<8x128xf32>
      tpu.vector_store %arg8[%c0_6, %c0_7], %13 {strides = array<i32>} : memref<8x128xf32, #tpu.memory_space<vmem>>, vector<8x128xf32>,
    } else {
    }
    %c0 = arith.constant 0 : index
    %4 = memref.load %arg2[%c0] : memref<1xi32, #tpu.memory_space<smem>>
    %5 = arith.cmpi sge, %0, %4 : i32
    %6 = arith.extui %5 : i1 to i32
    %c0_i32_1 = arith.constant 0 : i32
    %7 = arith.cmpi ne, %6, %c0_i32_1 : i32
    scf.if %7 {
      %cst = arith.constant 0.000000e+00 : f32
      %11 = vector.broadcast %cst : f32 to vector<8x8x128xf32>
      %c0_3 = arith.constant 0 : index
      %c0_4 = arith.constant 0 : index
      %c0_5 = arith.constant 0 : index
      %12 = vector.load %arg6[%c0_3, %c0_4, %c0_5] : memref<8x8x128xf32, #tpu.memory_space<vmem>>, vector<8x8x128xf32>
      tpu.vector_store %arg6[%c0_3, %c0_4, %c0_5], %11 {strides = array<i32>} : memref<8x8x128xf32, #tpu.memory_space<vmem>>, vector<8x8x128xf32>,
    } else {
    }
    %8 = arith.cmpi slt, %0, %4 : i32
    %9 = arith.extui %8 : i1 to i32
    %c0_i32_2 = arith.constant 0 : i32
    %10 = arith.cmpi ne, %9, %c0_i32_2 : i32
    scf.if %10 {
      %c0_3 = arith.constant 0 : index
      %c0_4 = arith.constant 0 : index
      %11 = vector.load %arg3[%c0_3, %c0_4] : memref<8x1xi32, #tpu.memory_space<vmem>>, vector<8x1xi32>
      %c0_5 = arith.constant 0 : index
      %c0_6 = arith.constant 0 : index
      %12 = vector.load %arg5[%c0_5, %c0_6] : memref<128x512xf32, #tpu.memory_space<vmem>>, vector<128x512xf32>
      %c0_7 = arith.constant 0 : index
      %c0_8 = arith.constant 0 : index
      %13 = vector.load %arg7[%c0_7, %c0_8] : memref<8x128xf32, #tpu.memory_space<vmem>>, vector<8x128xf32>
      %c0_9 = arith.constant 0 : index
      %c0_10 = arith.constant 0 : index
      %14 = vector.load %arg8[%c0_9, %c0_10] : memref<8x128xf32, #tpu.memory_space<vmem>>, vector<8x128xf32>
      %c0_i32_11 = arith.constant 0 : i32
      %15 = arith.index_cast %c0_i32_11 : i32 to index
      %c0_12 = arith.constant 0 : index
      %c0_13 = arith.constant 0 : index
      %16 = vector.load %arg4[%15, %c0_12, %c0_13] : memref<8x8x512xf32, #tpu.memory_space<vmem>>, vector<1x8x512xf32>
      %17 = vector.shape_cast %16 : vector<1x8x512xf32> to vector<8x512xf32>
      %cst = arith.constant dense<0.000000e+00> : vector<8x512xf32>
      %18 = tpu.matmul %13, %12, %cst {dimension_numbers = #tpu.dot_dimension_numbers<[1], [0], [0], [1], [0, 0, 1, 1], [], []>} : vector<8x128xf32>, vector<128x512xf32>, vector<8x512xf32> -> vector<8x512xf32>
      %19 = arith.addf %17, %18 : vector<8x512xf32>
      %20 = vector.extract_strided_slice %19 {offsets = [0, 0], sizes = [8, 384], strides = [1, 1]} : vector<8x512xf32> to vector<8x384xf32>
      %21 = arith.negf %20 : vector<8x384xf32>
      %22 = math.exp %21 : vector<8x384xf32>
      %cst_14 = arith.constant 1.000000e+00 : f32
      %23 = vector.broadcast %cst_14 : f32 to vector<8x384xf32>
      %24 = arith.addf %23, %22 : vector<8x384xf32>
      %25 = arith.divf %23, %24 : vector<8x384xf32>
      %26 = vector.extract_strided_slice %25 {offsets = [0, 0], sizes = [8, 128], strides = [1, 1]} : vector<8x384xf32> to vector<8x128xf32>
      %27 = vector.extract_strided_slice %25 {offsets = [0, 128], sizes = [8, 128], strides = [1, 1]} : vector<8x384xf32> to vector<8x128xf32>
      %28 = vector.extract_strided_slice %25 {offsets = [0, 256], sizes = [8, 128], strides = [1, 1]} : vector<8x384xf32> to vector<8x128xf32>
      %29 = vector.extract_strided_slice %19 {offsets = [0, 384], sizes = [8, 128], strides = [1, 1]} : vector<8x512xf32> to vector<8x128xf32>
      %30 = math.tanh %29 : vector<8x128xf32>
      %31 = arith.mulf %27, %14 : vector<8x128xf32>
      %32 = arith.mulf %26, %30 : vector<8x128xf32>
      %33 = arith.addf %31, %32 : vector<8x128xf32>
      %34 = math.tanh %33 : vector<8x128xf32>
      %35 = arith.mulf %28, %34 : vector<8x128xf32>
      %36 = arith.addi %0, %c0_i32_11 : i32
      %37 = vector.broadcast %36 : i32 to vector<8x1xi32>
      %38 = arith.cmpi sgt, %11, %37 : vector<8x1xi32>
      %39 = vector.shape_cast %38 : vector<8x1xi1> to vector<8x1xi1>
      %40 = vector.broadcast %39 : vector<8x1xi1> to vector<8x128xi1>
      %41 = arith.select %40, %35, %13 : vector<8x128xi1>, vector<8x128xf32>
      %42 = vector.shape_cast %38 : vector<8x1xi1> to vector<8x1xi1>
      %43 = vector.broadcast %42 : vector<8x1xi1> to vector<8x128xi1>
      %44 = arith.select %43, %33, %14 : vector<8x128xi1>, vector<8x128xf32>
      %cst_15 = arith.constant 0.000000e+00 : f32
      %45 = vector.shape_cast %38 : vector<8x1xi1> to vector<8x1xi1>
      %46 = vector.broadcast %45 : vector<8x1xi1> to vector<8x128xi1>
      %47 = vector.broadcast %cst_15 : f32 to vector<8x128xf32>
      %48 = arith.select %46, %35, %47 : vector<8x128xi1>, vector<8x128xf32>
      %49 = arith.index_cast %c0_i32_11 : i32 to index
      %c0_16 = arith.constant 0 : index
      %c0_17 = arith.constant 0 : index
      %50 = vector.load %arg6[%49, %c0_16, %c0_17] : memref<8x8x128xf32, #tpu.memory_space<vmem>>, vector<1x8x128xf32>
      %51 = vector.shape_cast %50 : vector<1x8x128xf32> to vector<8x128xf32>
      %52 = vector.shape_cast %48 : vector<8x128xf32> to vector<1x8x128xf32>
      tpu.vector_store %arg6[%49, %c0_16, %c0_17], %52 {strides = array<i32>} : memref<8x8x128xf32, #tpu.memory_space<vmem>>, vector<1x8x128xf32>,
      %c1_i32 = arith.constant 1 : i32
      %53 = arith.index_cast %c1_i32 : i32 to index
      %c0_18 = arith.constant 0 : index
      %c0_19 = arith.constant 0 : index
      %54 = vector.load %arg4[%53, %c0_18, %c0_19] : memref<8x8x512xf32, #tpu.memory_space<vmem>>, vector<1x8x512xf32>
      %55 = vector.shape_cast %54 : vector<1x8x512xf32> to vector<8x512xf32>
      %cst_20 = arith.constant dense<0.000000e+00> : vector<8x512xf32>
      %56 = tpu.matmul %41, %12, %cst_20 {dimension_numbers = #tpu.dot_dimension_numbers<[1], [0], [0], [1], [0, 0, 1, 1], [], []>} : vector<8x128xf32>, vector<128x512xf32>, vector<8x512xf32> -> vector<8x512xf32>
      %57 = arith.addf %55, %56 : vector<8x512xf32>
      %58 = vector.extract_strided_slice %57 {offsets = [0, 0], sizes = [8, 384], strides = [1, 1]} : vector<8x512xf32> to vector<8x384xf32>
      %59 = arith.negf %58 : vector<8x384xf32>
      %60 = math.exp %59 : vector<8x384xf32>
      %cst_21 = arith.constant 1.000000e+00 : f32
      %61 = vector.broadcast %cst_21 : f32 to vector<8x384xf32>
      %62 = arith.addf %61, %60 : vector<8x384xf32>
      %63 = arith.divf %61, %62 : vector<8x384xf32>
      %64 = vector.extract_strided_slice %63 {offsets = [0, 0], sizes = [8, 128], strides = [1, 1]} : vector<8x384xf32> to vector<8x128xf32>
      %65 = vector.extract_strided_slice %63 {offsets = [0, 128], sizes = [8, 128], strides = [1, 1]} : vector<8x384xf32> to vector<8x128xf32>
      %66 = vector.extract_strided_slice %63 {offsets = [0, 256], sizes = [8, 128], strides = [1, 1]} : vector<8x384xf32> to vector<8x128xf32>
      %67 = vector.extract_strided_slice %57 {offsets = [0, 384], sizes = [8, 128], strides = [1, 1]} : vector<8x512xf32> to vector<8x128xf32>
      %68 = math.tanh %67 : vector<8x128xf32>
      %69 = arith.mulf %65, %44 : vector<8x128xf32>
      %70 = arith.mulf %64, %68 : vector<8x128xf32>
      %71 = arith.addf %69, %70 : vector<8x128xf32>
      %72 = math.tanh %71 : vector<8x128xf32>
      %73 = arith.mulf %66, %72 : vector<8x128xf32>
      %74 = arith.addi %0, %c1_i32 : i32
      %75 = vector.broadcast %74 : i32 to vector<8x1xi32>
      %76 = arith.cmpi sgt, %11, %75 : vector<8x1xi32>
      %77 = vector.shape_cast %76 : vector<8x1xi1> to vector<8x1xi1>
      %78 = vector.broadcast %77 : vector<8x1xi1> to vector<8x128xi1>
      %79 = arith.select %78, %73, %41 : vector<8x128xi1>, vector<8x128xf32>
      %80 = vector.shape_cast %76 : vector<8x1xi1> to vector<8x1xi1>
      %81 = vector.broadcast %80 : vector<8x1xi1> to vector<8x128xi1>
      %82 = arith.select %81, %71, %44 : vector<8x128xi1>, vector<8x128xf32>
      %cst_22 = arith.constant 0.000000e+00 : f32
      %83 = vector.shape_cast %76 : vector<8x1xi1> to vector<8x1xi1>
      %84 = vector.broadcast %83 : vector<8x1xi1> to vector<8x128xi1>
      %85 = vector.broadcast %cst_22 : f32 to vector<8x128xf32>
      %86 = arith.select %84, %73, %85 : vector<8x128xi1>, vector<8x128xf32>
      %87 = arith.index_cast %c1_i32 : i32 to index
      %c0_23 = arith.constant 0 : index
      %c0_24 = arith.constant 0 : index
      %88 = vector.load %arg6[%87, %c0_23, %c0_24] : memref<8x8x128xf32, #tpu.memory_space<vmem>>, vector<1x8x128xf32>
      %89 = vector.shape_cast %88 : vector<1x8x128xf32> to vector<8x128xf32>
      %90 = vector.shape_cast %86 : vector<8x128xf32> to vector<1x8x128xf32>
      tpu.vector_store %arg6[%87, %c0_23, %c0_24], %90 {strides = array<i32>} : memref<8x8x128xf32, #tpu.memory_space<vmem>>, vector<1x8x128xf32>,
      %c2_i32 = arith.constant 2 : i32
      %91 = arith.index_cast %c2_i32 : i32 to index
      %c0_25 = arith.constant 0 : index
      %c0_26 = arith.constant 0 : index
      %92 = vector.load %arg4[%91, %c0_25, %c0_26] : memref<8x8x512xf32, #tpu.memory_space<vmem>>, vector<1x8x512xf32>
      %93 = vector.shape_cast %92 : vector<1x8x512xf32> to vector<8x512xf32>
      %cst_27 = arith.constant dense<0.000000e+00> : vector<8x512xf32>
      %94 = tpu.matmul %79, %12, %cst_27 {dimension_numbers = #tpu.dot_dimension_numbers<[1], [0], [0], [1], [0, 0, 1, 1], [], []>} : vector<8x128xf32>, vector<128x512xf32>, vector<8x512xf32> -> vector<8x512xf32>
      %95 = arith.addf %93, %94 : vector<8x512xf32>
      %96 = vector.extract_strided_slice %95 {offsets = [0, 0], sizes = [8, 384], strides = [1, 1]} : vector<8x512xf32> to vector<8x384xf32>
      %97 = arith.negf %96 : vector<8x384xf32>
      %98 = math.exp %97 : vector<8x384xf32>
      %cst_28 = arith.constant 1.000000e+00 : f32
      %99 = vector.broadcast %cst_28 : f32 to vector<8x384xf32>
      %100 = arith.addf %99, %98 : vector<8x384xf32>
      %101 = arith.divf %99, %100 : vector<8x384xf32>
      %102 = vector.extract_strided_slice %101 {offsets = [0, 0], sizes = [8, 128], strides = [1, 1]} : vector<8x384xf32> to vector<8x128xf32>
      %103 = vector.extract_strided_slice %101 {offsets = [0, 128], sizes = [8, 128], strides = [1, 1]} : vector<8x384xf32> to vector<8x128xf32>
      %104 = vector.extract_strided_slice %101 {offsets = [0, 256], sizes = [8, 128], strides = [1, 1]} : vector<8x384xf32> to vector<8x128xf32>
      %105 = vector.extract_strided_slice %95 {offsets = [0, 384], sizes = [8, 128], strides = [1, 1]} : vector<8x512xf32> to vector<8x128xf32>
      %106 = math.tanh %105 : vector<8x128xf32>
      %107 = arith.mulf %103, %82 : vector<8x128xf32>
      %108 = arith.mulf %102, %106 : vector<8x128xf32>
      %109 = arith.addf %107, %108 : vector<8x128xf32>
      %110 = math.tanh %109 : vector<8x128xf32>
      %111 = arith.mulf %104, %110 : vector<8x128xf32>
      %112 = arith.addi %0, %c2_i32 : i32
      %113 = vector.broadcast %112 : i32 to vector<8x1xi32>
      %114 = arith.cmpi sgt, %11, %113 : vector<8x1xi32>
      %115 = vector.shape_cast %114 : vector<8x1xi1> to vector<8x1xi1>
      %116 = vector.broadcast %115 : vector<8x1xi1> to vector<8x128xi1>
      %117 = arith.select %116, %111, %79 : vector<8x128xi1>, vector<8x128xf32>
      %118 = vector.shape_cast %114 : vector<8x1xi1> to vector<8x1xi1>
      %119 = vector.broadcast %118 : vector<8x1xi1> to vector<8x128xi1>
      %120 = arith.select %119, %109, %82 : vector<8x128xi1>, vector<8x128xf32>
      %cst_29 = arith.constant 0.000000e+00 : f32
      %121 = vector.shape_cast %114 : vector<8x1xi1> to vector<8x1xi1>
      %122 = vector.broadcast %121 : vector<8x1xi1> to vector<8x128xi1>
      %123 = vector.broadcast %cst_29 : f32 to vector<8x128xf32>
      %124 = arith.select %122, %111, %123 : vector<8x128xi1>, vector<8x128xf32>
      %125 = arith.index_cast %c2_i32 : i32 to index
      %c0_30 = arith.constant 0 : index
      %c0_31 = arith.constant 0 : index
      %126 = vector.load %arg6[%125, %c0_30, %c0_31] : memref<8x8x128xf32, #tpu.memory_space<vmem>>, vector<1x8x128xf32>
      %127 = vector.shape_cast %126 : vector<1x8x128xf32> to vector<8x128xf32>
      %128 = vector.shape_cast %124 : vector<8x128xf32> to vector<1x8x128xf32>
      tpu.vector_store %arg6[%125, %c0_30, %c0_31], %128 {strides = array<i32>} : memref<8x8x128xf32, #tpu.memory_space<vmem>>, vector<1x8x128xf32>,
      %c3_i32 = arith.constant 3 : i32
      %129 = arith.index_cast %c3_i32 : i32 to index
      %c0_32 = arith.constant 0 : index
      %c0_33 = arith.constant 0 : index
      %130 = vector.load %arg4[%129, %c0_32, %c0_33] : memref<8x8x512xf32, #tpu.memory_space<vmem>>, vector<1x8x512xf32>
      %131 = vector.shape_cast %130 : vector<1x8x512xf32> to vector<8x512xf32>
      %cst_34 = arith.constant dense<0.000000e+00> : vector<8x512xf32>
      %132 = tpu.matmul %117, %12, %cst_34 {dimension_numbers = #tpu.dot_dimension_numbers<[1], [0], [0], [1], [0, 0, 1, 1], [], []>} : vector<8x128xf32>, vector<128x512xf32>, vector<8x512xf32> -> vector<8x512xf32>
      %133 = arith.addf %131, %132 : vector<8x512xf32>
      %134 = vector.extract_strided_slice %133 {offsets = [0, 0], sizes = [8, 384], strides = [1, 1]} : vector<8x512xf32> to vector<8x384xf32>
      %135 = arith.negf %134 : vector<8x384xf32>
      %136 = math.exp %135 : vector<8x384xf32>
      %cst_35 = arith.constant 1.000000e+00 : f32
      %137 = vector.broadcast %cst_35 : f32 to vector<8x384xf32>
      %138 = arith.addf %137, %136 : vector<8x384xf32>
      %139 = arith.divf %137, %138 : vector<8x384xf32>
      %140 = vector.extract_strided_slice %139 {offsets = [0, 0], sizes = [8, 128], strides = [1, 1]} : vector<8x384xf32> to vector<8x128xf32>
      %141 = vector.extract_strided_slice %139 {offsets = [0, 128], sizes = [8, 128], strides = [1, 1]} : vector<8x384xf32> to vector<8x128xf32>
      %142 = vector.extract_strided_slice %139 {offsets = [0, 256], sizes = [8, 128], strides = [1, 1]} : vector<8x384xf32> to vector<8x128xf32>
      %143 = vector.extract_strided_slice %133 {offsets = [0, 384], sizes = [8, 128], strides = [1, 1]} : vector<8x512xf32> to vector<8x128xf32>
      %144 = math.tanh %143 : vector<8x128xf32>
      %145 = arith.mulf %141, %120 : vector<8x128xf32>
      %146 = arith.mulf %140, %144 : vector<8x128xf32>
      %147 = arith.addf %145, %146 : vector<8x128xf32>
      %148 = math.tanh %147 : vector<8x128xf32>
      %149 = arith.mulf %142, %148 : vector<8x128xf32>
      %150 = arith.addi %0, %c3_i32 : i32
      %151 = vector.broadcast %150 : i32 to vector<8x1xi32>
      %152 = arith.cmpi sgt, %11, %151 : vector<8x1xi32>
      %153 = vector.shape_cast %152 : vector<8x1xi1> to vector<8x1xi1>
      %154 = vector.broadcast %153 : vector<8x1xi1> to vector<8x128xi1>
      %155 = arith.select %154, %149, %117 : vector<8x128xi1>, vector<8x128xf32>
      %156 = vector.shape_cast %152 : vector<8x1xi1> to vector<8x1xi1>
      %157 = vector.broadcast %156 : vector<8x1xi1> to vector<8x128xi1>
      %158 = arith.select %157, %147, %120 : vector<8x128xi1>, vector<8x128xf32>
      %cst_36 = arith.constant 0.000000e+00 : f32
      %159 = vector.shape_cast %152 : vector<8x1xi1> to vector<8x1xi1>
      %160 = vector.broadcast %159 : vector<8x1xi1> to vector<8x128xi1>
      %161 = vector.broadcast %cst_36 : f32 to vector<8x128xf32>
      %162 = arith.select %160, %149, %161 : vector<8x128xi1>, vector<8x128xf32>
      %163 = arith.index_cast %c3_i32 : i32 to index
      %c0_37 = arith.constant 0 : index
      %c0_38 = arith.constant 0 : index
      %164 = vector.load %arg6[%163, %c0_37, %c0_38] : memref<8x8x128xf32, #tpu.memory_space<vmem>>, vector<1x8x128xf32>
      %165 = vector.shape_cast %164 : vector<1x8x128xf32> to vector<8x128xf32>
      %166 = vector.shape_cast %162 : vector<8x128xf32> to vector<1x8x128xf32>
      tpu.vector_store %arg6[%163, %c0_37, %c0_38], %166 {strides = array<i32>} : memref<8x8x128xf32, #tpu.memory_space<vmem>>, vector<1x8x128xf32>,
      %c4_i32 = arith.constant 4 : i32
      %167 = arith.index_cast %c4_i32 : i32 to index
      %c0_39 = arith.constant 0 : index
      %c0_40 = arith.constant 0 : index
      %168 = vector.load %arg4[%167, %c0_39, %c0_40] : memref<8x8x512xf32, #tpu.memory_space<vmem>>, vector<1x8x512xf32>
      %169 = vector.shape_cast %168 : vector<1x8x512xf32> to vector<8x512xf32>
      %cst_41 = arith.constant dense<0.000000e+00> : vector<8x512xf32>
      %170 = tpu.matmul %155, %12, %cst_41 {dimension_numbers = #tpu.dot_dimension_numbers<[1], [0], [0], [1], [0, 0, 1, 1], [], []>} : vector<8x128xf32>, vector<128x512xf32>, vector<8x512xf32> -> vector<8x512xf32>
      %171 = arith.addf %169, %170 : vector<8x512xf32>
      %172 = vector.extract_strided_slice %171 {offsets = [0, 0], sizes = [8, 384], strides = [1, 1]} : vector<8x512xf32> to vector<8x384xf32>
      %173 = arith.negf %172 : vector<8x384xf32>
      %174 = math.exp %173 : vector<8x384xf32>
      %cst_42 = arith.constant 1.000000e+00 : f32
      %175 = vector.broadcast %cst_42 : f32 to vector<8x384xf32>
      %176 = arith.addf %175, %174 : vector<8x384xf32>
      %177 = arith.divf %175, %176 : vector<8x384xf32>
      %178 = vector.extract_strided_slice %177 {offsets = [0, 0], sizes = [8, 128], strides = [1, 1]} : vector<8x384xf32> to vector<8x128xf32>
      %179 = vector.extract_strided_slice %177 {offsets = [0, 128], sizes = [8, 128], strides = [1, 1]} : vector<8x384xf32> to vector<8x128xf32>
      %180 = vector.extract_strided_slice %177 {offsets = [0, 256], sizes = [8, 128], strides = [1, 1]} : vector<8x384xf32> to vector<8x128xf32>
      %181 = vector.extract_strided_slice %171 {offsets = [0, 384], sizes = [8, 128], strides = [1, 1]} : vector<8x512xf32> to vector<8x128xf32>
      %182 = math.tanh %181 : vector<8x128xf32>
      %183 = arith.mulf %179, %158 : vector<8x128xf32>
      %184 = arith.mulf %178, %182 : vector<8x128xf32>
      %185 = arith.addf %183, %184 : vector<8x128xf32>
      %186 = math.tanh %185 : vector<8x128xf32>
      %187 = arith.mulf %180, %186 : vector<8x128xf32>
      %188 = arith.addi %0, %c4_i32 : i32
      %189 = vector.broadcast %188 : i32 to vector<8x1xi32>
      %190 = arith.cmpi sgt, %11, %189 : vector<8x1xi32>
      %191 = vector.shape_cast %190 : vector<8x1xi1> to vector<8x1xi1>
      %192 = vector.broadcast %191 : vector<8x1xi1> to vector<8x128xi1>
      %193 = arith.select %192, %187, %155 : vector<8x128xi1>, vector<8x128xf32>
      %194 = vector.shape_cast %190 : vector<8x1xi1> to vector<8x1xi1>
      %195 = vector.broadcast %194 : vector<8x1xi1> to vector<8x128xi1>
      %196 = arith.select %195, %185, %158 : vector<8x128xi1>, vector<8x128xf32>
      %cst_43 = arith.constant 0.000000e+00 : f32
      %197 = vector.shape_cast %190 : vector<8x1xi1> to vector<8x1xi1>
      %198 = vector.broadcast %197 : vector<8x1xi1> to vector<8x128xi1>
      %199 = vector.broadcast %cst_43 : f32 to vector<8x128xf32>
      %200 = arith.select %198, %187, %199 : vector<8x128xi1>, vector<8x128xf32>
      %201 = arith.index_cast %c4_i32 : i32 to index
      %c0_44 = arith.constant 0 : index
      %c0_45 = arith.constant 0 : index
      %202 = vector.load %arg6[%201, %c0_44, %c0_45] : memref<8x8x128xf32, #tpu.memory_space<vmem>>, vector<1x8x128xf32>
      %203 = vector.shape_cast %202 : vector<1x8x128xf32> to vector<8x128xf32>
      %204 = vector.shape_cast %200 : vector<8x128xf32> to vector<1x8x128xf32>
      tpu.vector_store %arg6[%201, %c0_44, %c0_45], %204 {strides = array<i32>} : memref<8x8x128xf32, #tpu.memory_space<vmem>>, vector<1x8x128xf32>,
      %c5_i32 = arith.constant 5 : i32
      %205 = arith.index_cast %c5_i32 : i32 to index
      %c0_46 = arith.constant 0 : index
      %c0_47 = arith.constant 0 : index
      %206 = vector.load %arg4[%205, %c0_46, %c0_47] : memref<8x8x512xf32, #tpu.memory_space<vmem>>, vector<1x8x512xf32>
      %207 = vector.shape_cast %206 : vector<1x8x512xf32> to vector<8x512xf32>
      %cst_48 = arith.constant dense<0.000000e+00> : vector<8x512xf32>
      %208 = tpu.matmul %193, %12, %cst_48 {dimension_numbers = #tpu.dot_dimension_numbers<[1], [0], [0], [1], [0, 0, 1, 1], [], []>} : vector<8x128xf32>, vector<128x512xf32>, vector<8x512xf32> -> vector<8x512xf32>
      %209 = arith.addf %207, %208 : vector<8x512xf32>
      %210 = vector.extract_strided_slice %209 {offsets = [0, 0], sizes = [8, 384], strides = [1, 1]} : vector<8x512xf32> to vector<8x384xf32>
      %211 = arith.negf %210 : vector<8x384xf32>
      %212 = math.exp %211 : vector<8x384xf32>
      %cst_49 = arith.constant 1.000000e+00 : f32
      %213 = vector.broadcast %cst_49 : f32 to vector<8x384xf32>
      %214 = arith.addf %213, %212 : vector<8x384xf32>
      %215 = arith.divf %213, %214 : vector<8x384xf32>
      %216 = vector.extract_strided_slice %215 {offsets = [0, 0], sizes = [8, 128], strides = [1, 1]} : vector<8x384xf32> to vector<8x128xf32>
      %217 = vector.extract_strided_slice %215 {offsets = [0, 128], sizes = [8, 128], strides = [1, 1]} : vector<8x384xf32> to vector<8x128xf32>
      %218 = vector.extract_strided_slice %215 {offsets = [0, 256], sizes = [8, 128], strides = [1, 1]} : vector<8x384xf32> to vector<8x128xf32>
      %219 = vector.extract_strided_slice %209 {offsets = [0, 384], sizes = [8, 128], strides = [1, 1]} : vector<8x512xf32> to vector<8x128xf32>
      %220 = math.tanh %219 : vector<8x128xf32>
      %221 = arith.mulf %217, %196 : vector<8x128xf32>
      %222 = arith.mulf %216, %220 : vector<8x128xf32>
      %223 = arith.addf %221, %222 : vector<8x128xf32>
      %224 = math.tanh %223 : vector<8x128xf32>
      %225 = arith.mulf %218, %224 : vector<8x128xf32>
      %226 = arith.addi %0, %c5_i32 : i32
      %227 = vector.broadcast %226 : i32 to vector<8x1xi32>
      %228 = arith.cmpi sgt, %11, %227 : vector<8x1xi32>
      %229 = vector.shape_cast %228 : vector<8x1xi1> to vector<8x1xi1>
      %230 = vector.broadcast %229 : vector<8x1xi1> to vector<8x128xi1>
      %231 = arith.select %230, %225, %193 : vector<8x128xi1>, vector<8x128xf32>
      %232 = vector.shape_cast %228 : vector<8x1xi1> to vector<8x1xi1>
      %233 = vector.broadcast %232 : vector<8x1xi1> to vector<8x128xi1>
      %234 = arith.select %233, %223, %196 : vector<8x128xi1>, vector<8x128xf32>
      %cst_50 = arith.constant 0.000000e+00 : f32
      %235 = vector.shape_cast %228 : vector<8x1xi1> to vector<8x1xi1>
      %236 = vector.broadcast %235 : vector<8x1xi1> to vector<8x128xi1>
      %237 = vector.broadcast %cst_50 : f32 to vector<8x128xf32>
      %238 = arith.select %236, %225, %237 : vector<8x128xi1>, vector<8x128xf32>
      %239 = arith.index_cast %c5_i32 : i32 to index
      %c0_51 = arith.constant 0 : index
      %c0_52 = arith.constant 0 : index
      %240 = vector.load %arg6[%239, %c0_51, %c0_52] : memref<8x8x128xf32, #tpu.memory_space<vmem>>, vector<1x8x128xf32>
      %241 = vector.shape_cast %240 : vector<1x8x128xf32> to vector<8x128xf32>
      %242 = vector.shape_cast %238 : vector<8x128xf32> to vector<1x8x128xf32>
      tpu.vector_store %arg6[%239, %c0_51, %c0_52], %242 {strides = array<i32>} : memref<8x8x128xf32, #tpu.memory_space<vmem>>, vector<1x8x128xf32>,
      %c6_i32 = arith.constant 6 : i32
      %243 = arith.index_cast %c6_i32 : i32 to index
      %c0_53 = arith.constant 0 : index
      %c0_54 = arith.constant 0 : index
      %244 = vector.load %arg4[%243, %c0_53, %c0_54] : memref<8x8x512xf32, #tpu.memory_space<vmem>>, vector<1x8x512xf32>
      %245 = vector.shape_cast %244 : vector<1x8x512xf32> to vector<8x512xf32>
      %cst_55 = arith.constant dense<0.000000e+00> : vector<8x512xf32>
      %246 = tpu.matmul %231, %12, %cst_55 {dimension_numbers = #tpu.dot_dimension_numbers<[1], [0], [0], [1], [0, 0, 1, 1], [], []>} : vector<8x128xf32>, vector<128x512xf32>, vector<8x512xf32> -> vector<8x512xf32>
      %247 = arith.addf %245, %246 : vector<8x512xf32>
      %248 = vector.extract_strided_slice %247 {offsets = [0, 0], sizes = [8, 384], strides = [1, 1]} : vector<8x512xf32> to vector<8x384xf32>
      %249 = arith.negf %248 : vector<8x384xf32>
      %250 = math.exp %249 : vector<8x384xf32>
      %cst_56 = arith.constant 1.000000e+00 : f32
      %251 = vector.broadcast %cst_56 : f32 to vector<8x384xf32>
      %252 = arith.addf %251, %250 : vector<8x384xf32>
      %253 = arith.divf %251, %252 : vector<8x384xf32>
      %254 = vector.extract_strided_slice %253 {offsets = [0, 0], sizes = [8, 128], strides = [1, 1]} : vector<8x384xf32> to vector<8x128xf32>
      %255 = vector.extract_strided_slice %253 {offsets = [0, 128], sizes = [8, 128], strides = [1, 1]} : vector<8x384xf32> to vector<8x128xf32>
      %256 = vector.extract_strided_slice %253 {offsets = [0, 256], sizes = [8, 128], strides = [1, 1]} : vector<8x384xf32> to vector<8x128xf32>
      %257 = vector.extract_strided_slice %247 {offsets = [0, 384], sizes = [8, 128], strides = [1, 1]} : vector<8x512xf32> to vector<8x128xf32>
      %258 = math.tanh %257 : vector<8x128xf32>
      %259 = arith.mulf %255, %234 : vector<8x128xf32>
      %260 = arith.mulf %254, %258 : vector<8x128xf32>
      %261 = arith.addf %259, %260 : vector<8x128xf32>
      %262 = math.tanh %261 : vector<8x128xf32>
      %263 = arith.mulf %256, %262 : vector<8x128xf32>
      %264 = arith.addi %0, %c6_i32 : i32
      %265 = vector.broadcast %264 : i32 to vector<8x1xi32>
      %266 = arith.cmpi sgt, %11, %265 : vector<8x1xi32>
      %267 = vector.shape_cast %266 : vector<8x1xi1> to vector<8x1xi1>
      %268 = vector.broadcast %267 : vector<8x1xi1> to vector<8x128xi1>
      %269 = arith.select %268, %263, %231 : vector<8x128xi1>, vector<8x128xf32>
      %270 = vector.shape_cast %266 : vector<8x1xi1> to vector<8x1xi1>
      %271 = vector.broadcast %270 : vector<8x1xi1> to vector<8x128xi1>
      %272 = arith.select %271, %261, %234 : vector<8x128xi1>, vector<8x128xf32>
      %cst_57 = arith.constant 0.000000e+00 : f32
      %273 = vector.shape_cast %266 : vector<8x1xi1> to vector<8x1xi1>
      %274 = vector.broadcast %273 : vector<8x1xi1> to vector<8x128xi1>
      %275 = vector.broadcast %cst_57 : f32 to vector<8x128xf32>
      %276 = arith.select %274, %263, %275 : vector<8x128xi1>, vector<8x128xf32>
      %277 = arith.index_cast %c6_i32 : i32 to index
      %c0_58 = arith.constant 0 : index
      %c0_59 = arith.constant 0 : index
      %278 = vector.load %arg6[%277, %c0_58, %c0_59] : memref<8x8x128xf32, #tpu.memory_space<vmem>>, vector<1x8x128xf32>
      %279 = vector.shape_cast %278 : vector<1x8x128xf32> to vector<8x128xf32>
      %280 = vector.shape_cast %276 : vector<8x128xf32> to vector<1x8x128xf32>
      tpu.vector_store %arg6[%277, %c0_58, %c0_59], %280 {strides = array<i32>} : memref<8x8x128xf32, #tpu.memory_space<vmem>>, vector<1x8x128xf32>,
      %c7_i32 = arith.constant 7 : i32
      %281 = arith.index_cast %c7_i32 : i32 to index
      %c0_60 = arith.constant 0 : index
      %c0_61 = arith.constant 0 : index
      %282 = vector.load %arg4[%281, %c0_60, %c0_61] : memref<8x8x512xf32, #tpu.memory_space<vmem>>, vector<1x8x512xf32>
      %283 = vector.shape_cast %282 : vector<1x8x512xf32> to vector<8x512xf32>
      %cst_62 = arith.constant dense<0.000000e+00> : vector<8x512xf32>
      %284 = tpu.matmul %269, %12, %cst_62 {dimension_numbers = #tpu.dot_dimension_numbers<[1], [0], [0], [1], [0, 0, 1, 1], [], []>} : vector<8x128xf32>, vector<128x512xf32>, vector<8x512xf32> -> vector<8x512xf32>
      %285 = arith.addf %283, %284 : vector<8x512xf32>
      %286 = vector.extract_strided_slice %285 {offsets = [0, 0], sizes = [8, 384], strides = [1, 1]} : vector<8x512xf32> to vector<8x384xf32>
      %287 = arith.negf %286 : vector<8x384xf32>
      %288 = math.exp %287 : vector<8x384xf32>
      %cst_63 = arith.constant 1.000000e+00 : f32
      %289 = vector.broadcast %cst_63 : f32 to vector<8x384xf32>
      %290 = arith.addf %289, %288 : vector<8x384xf32>
      %291 = arith.divf %289, %290 : vector<8x384xf32>
      %292 = vector.extract_strided_slice %291 {offsets = [0, 0], sizes = [8, 128], strides = [1, 1]} : vector<8x384xf32> to vector<8x128xf32>
      %293 = vector.extract_strided_slice %291 {offsets = [0, 128], sizes = [8, 128], strides = [1, 1]} : vector<8x384xf32> to vector<8x128xf32>
      %294 = vector.extract_strided_slice %291 {offsets = [0, 256], sizes = [8, 128], strides = [1, 1]} : vector<8x384xf32> to vector<8x128xf32>
      %295 = vector.extract_strided_slice %285 {offsets = [0, 384], sizes = [8, 128], strides = [1, 1]} : vector<8x512xf32> to vector<8x128xf32>
      %296 = math.tanh %295 : vector<8x128xf32>
      %297 = arith.mulf %293, %272 : vector<8x128xf32>
      %298 = arith.mulf %292, %296 : vector<8x128xf32>
      %299 = arith.addf %297, %298 : vector<8x128xf32>
      %300 = math.tanh %299 : vector<8x128xf32>
      %301 = arith.mulf %294, %300 : vector<8x128xf32>
      %302 = arith.addi %0, %c7_i32 : i32
      %303 = vector.broadcast %302 : i32 to vector<8x1xi32>
      %304 = arith.cmpi sgt, %11, %303 : vector<8x1xi32>
      %305 = vector.shape_cast %304 : vector<8x1xi1> to vector<8x1xi1>
      %306 = vector.broadcast %305 : vector<8x1xi1> to vector<8x128xi1>
      %307 = arith.select %306, %301, %269 : vector<8x128xi1>, vector<8x128xf32>
      %308 = vector.shape_cast %304 : vector<8x1xi1> to vector<8x1xi1>
      %309 = vector.broadcast %308 : vector<8x1xi1> to vector<8x128xi1>
      %310 = arith.select %309, %299, %272 : vector<8x128xi1>, vector<8x128xf32>
      %cst_64 = arith.constant 0.000000e+00 : f32
      %311 = vector.shape_cast %304 : vector<8x1xi1> to vector<8x1xi1>
      %312 = vector.broadcast %311 : vector<8x1xi1> to vector<8x128xi1>
      %313 = vector.broadcast %cst_64 : f32 to vector<8x128xf32>
      %314 = arith.select %312, %301, %313 : vector<8x128xi1>, vector<8x128xf32>
      %315 = arith.index_cast %c7_i32 : i32 to index
      %c0_65 = arith.constant 0 : index
      %c0_66 = arith.constant 0 : index
      %316 = vector.load %arg6[%315, %c0_65, %c0_66] : memref<8x8x128xf32, #tpu.memory_space<vmem>>, vector<1x8x128xf32>
      %317 = vector.shape_cast %316 : vector<1x8x128xf32> to vector<8x128xf32>
      %318 = vector.shape_cast %314 : vector<8x128xf32> to vector<1x8x128xf32>
      tpu.vector_store %arg6[%315, %c0_65, %c0_66], %318 {strides = array<i32>} : memref<8x8x128xf32, #tpu.memory_space<vmem>>, vector<1x8x128xf32>,
      %c8_i32_67 = arith.constant 8 : i32
      %c0_68 = arith.constant 0 : index
      %c0_69 = arith.constant 0 : index
      %319 = vector.load %arg7[%c0_68, %c0_69] : memref<8x128xf32, #tpu.memory_space<vmem>>, vector<8x128xf32>
      tpu.vector_store %arg7[%c0_68, %c0_69], %307 {strides = array<i32>} : memref<8x128xf32, #tpu.memory_space<vmem>>, vector<8x128xf32>,
      %c0_70 = arith.constant 0 : index
      %c0_71 = arith.constant 0 : index
      %320 = vector.load %arg8[%c0_70, %c0_71] : memref<8x128xf32, #tpu.memory_space<vmem>>, vector<8x128xf32>
      tpu.vector_store %arg8[%c0_70, %c0_71], %310 {strides = array<i32>} : memref<8x128xf32, #tpu.memory_space<vmem>>, vector<8x128xf32>,
    } else {
    }
    return
  }
  func.func @transform_0(%arg0: i32, %arg1: i32, %arg2: memref<1xi32, #tpu.memory_space<smem>>) -> (i32, i32) {
    %c0_i32 = arith.constant 0 : i32
    %c0_i32_0 = arith.constant 0 : i32
    return %arg0, %c0_i32 : i32, i32
  }
  func.func @transform_1(%arg0: i32, %arg1: i32, %arg2: memref<1xi32, #tpu.memory_space<smem>>) -> (i32, i32, i32) {
    %c0_i32 = arith.constant 0 : i32
    %c0_i32_0 = arith.constant 0 : i32
    return %arg1, %arg0, %c0_i32 : i32, i32, i32
  }
  func.func @transform_2(%arg0: i32, %arg1: i32, %arg2: memref<1xi32, #tpu.memory_space<smem>>) -> (i32, i32) {
    %c0_i32 = arith.constant 0 : i32
    %c0_i32_0 = arith.constant 0 : i32
    %c0_i32_1 = arith.constant 0 : i32
    return %c0_i32, %c0_i32_0 : i32, i32
  }
  func.func @transform_3(%arg0: i32, %arg1: i32, %arg2: memref<1xi32, #tpu.memory_space<smem>>) -> (i32, i32, i32) {
    %c0_i32 = arith.constant 0 : i32
    %c0_i32_0 = arith.constant 0 : i32
    return %arg1, %arg0, %c0_i32 : i32, i32, i32
  }
}

</mosaic_0001>

<llo_original>
// kernel: code_expression_tokens_sequence_encoder.1
$region0: #{code_expression_tokens_sequence_encoder.1}
  #allocation0 [shape = 'u32[]', space=smem, size = 0x4, offset = 0x4, fixed_abs, tag = 'smem constant byte address 0x4 - core index']
  #allocation1 [shape = 'u32[144,128]{1,0:T(1,128)}', space=vmem, size = 0x12000, scoped, tag = 'internal scratch']
  #allocation2 [shape = 'f32[8,128]{1,0:T(8,128)}', space=vmem, size = 0x1000, scoped, tag = 'scratch operand']
  #allocation3 [shape = 'f32[8,128]{1,0:T(8,128)}', space=vmem, size = 0x1000, scoped, tag = 'scratch operand']
  #allocation4 [shape = 's32[1]{0}', space=sflag, size = 0x4, scoped, tag = 'scoped memory for code_expression_tokens_sequence_encoder.1']
  #allocation5 [shape = 's32[1]{0:T(128)S(6)}', space=smem, size = 0x200, scoped, tag = 'prefetched SMEM operand 0']
  %s0 = inlined_call_operand.<no memory space> [shape: s32[1], index: 0, kind: input, shape index: {}]
  %s1 = inlined_call_operand.vmem [shape: s32[8,1], index: 1, kind: input, shape index: {}]
  %s2 = inlined_call_operand.vmem [shape: f32[8,8,512], index: 2, kind: input, shape index: {}]
  %s3 = inlined_call_operand.vmem [shape: f32[128,512], index: 3, kind: input, shape index: {}]
  %s4 = inlined_call_operand.vmem [shape: f32[8,8,128], index: 4, kind: output, shape index: {}]
  %s5 = sld [smem:[#allocation0]]
  $region34: #{code_expression_tokens_sequence_encoder.1} parent=0
    _
  %s7 = ssub.s32 1, %s5
  %s8 = scalar_select 0, %s7, %s5
  %9 = sst [smem:[#allocation5]] %s0
  // Predicated region
  $region2: #{code_expression_tokens_sequence_encoder.1} parent=0 // pred_check
    _
  $region3: #{code_expression_tokens_sequence_encoder.1} parent=0 // pred_check_branch
    %11 = sbr.rel (0) target = $region5
  $region4: #{code_expression_tokens_sequence_encoder.1} parent=0 // pred_region
    _
  $region5: #{code_expression_tokens_sequence_encoder.1} parent=0 // pred_fallthru
    _
  // Predicated region
  $region6: #{code_expression_tokens_sequence_encoder.1} parent=0 // pred_check
    _
  $region7: #{code_expression_tokens_sequence_encoder.1} parent=0 // pred_check_branch
    %13 = sbr.rel (0) target = $region9
  $region8: #{code_expression_tokens_sequence_encoder.1} parent=0 // pred_region
    _
  $region9: #{code_expression_tokens_sequence_encoder.1} parent=0 // pred_fallthru
    _
  // Predicated region
  $region10: #{code_expression_tokens_sequence_encoder.1} parent=0 // pred_check
    _
  $region11: #{code_expression_tokens_sequence_encoder.1} parent=0 // pred_check_branch
    %15 = sbr.rel (0) target = $region13
  $region12: #{code_expression_tokens_sequence_encoder.1} parent=0 // pred_region
    _
  $region13: #{code_expression_tokens_sequence_encoder.1} parent=0 // pred_fallthru
    _
  %s16 = smul.u32 0, 8
  %p17 = scmp.eq.s32.totalorder 0, 0
  // Predicated region
  $region14: #{code_expression_tokens_sequence_encoder.1} parent=0 // pred_check
    %p18 = pneg %p17
  $region15: #{code_expression_tokens_sequence_encoder.1} parent=0 // pred_check_branch
    %20 = sbr.rel (%p18) target = $region17
  $region16: #{code_expression_tokens_sequence_encoder.1} parent=0 // pred_region
    %21 = vst [vmem:[#allocation2] sm:$0xff] 0.0
    %22 = vst [vmem:[#allocation3] sm:$0xff] 0.0
  $region17: #{code_expression_tokens_sequence_encoder.1} parent=0 // pred_fallthru
    _
  %s23 = sld [smem:[#allocation5]]
  %p24 = scmp.ge.s32.totalorder %s16, %s23
  // Predicated region
  $region18: #{code_expression_tokens_sequence_encoder.1} parent=0 // pred_check
    %p25 = pneg %p24
  $region19: #{code_expression_tokens_sequence_encoder.1} parent=0 // pred_check_branch
    %27 = sbr.rel (%p25) target = $region21
  $region20: #{code_expression_tokens_sequence_encoder.1} parent=0 // pred_region
    %28 = vst [vmem:[%s4] sm:$0xff] 0.0
    %29 = vst [vmem:[%s4 + $0x8] sm:$0xff] 0.0
    %30 = vst [vmem:[%s4 + $0x10] sm:$0xff] 0.0
    %31 = vst [vmem:[%s4 + $0x18] sm:$0xff] 0.0
    %32 = vst [vmem:[%s4 + $0x20] sm:$0xff] 0.0
    %33 = vst [vmem:[%s4 + $0x28] sm:$0xff] 0.0
    %34 = vst [vmem:[%s4 + $0x30] sm:$0xff] 0.0
    %35 = vst [vmem:[%s4 + $0x38] sm:$0xff] 0.0
  $region21: #{code_expression_tokens_sequence_encoder.1} parent=0 // pred_fallthru
    _
  %p36 = scmp.lt.s32.totalorder %s16, %s23
  // Predicated region
  $region22: #{code_expression_tokens_sequence_encoder.1} parent=0 // pred_check
    %p37 = pneg %p36
  $region23: #{code_expression_tokens_sequence_encoder.1} parent=0 // pred_check_branch
    %39 = sbr.rel (%p37) target = $region25
  $region24: #{code_expression_tokens_sequence_encoder.1} parent=0 // pred_region
    %v40 = vld [vmem:[%s1] sm:$0xff]
    %v41 = vld [vmem:[%s3] sm:$0xff]
    %v42 = vld [vmem:[%s3 + $0x8] sm:$0xff]
    %v43 = vld [vmem:[%s3 + $0x10] sm:$0xff]
    %v44 = vld [vmem:[%s3 + $0x18] sm:$0xff]
    %v45 = vld [vmem:[%s3 + $0x20] sm:$0xff]
    %v46 = vld [vmem:[%s3 + $0x28] sm:$0xff]
    %v47 = vld [vmem:[%s3 + $0x30] sm:$0xff]
    %v48 = vld [vmem:[%s3 + $0x38] sm:$0xff]
    %v49 = vld [vmem:[%s3 + $0x40] sm:$0xff]
    %v50 = vld [vmem:[%s3 + $0x48] sm:$0xff]
    %v51 = vld [vmem:[%s3 + $0x50] sm:$0xff]
    %v52 = vld [vmem:[%s3 + $0x58] sm:$0xff]
    %v53 = vld [vmem:[%s3 + $0x60] sm:$0xff]
    %v54 = vld [vmem:[%s3 + $0x68] sm:$0xff]
    %v55 = vld [vmem:[%s3 + $0x70] sm:$0xff]
    %v56 = vld [vmem:[%s3 + $0x78] sm:$0xff]
    %v57 = vld [vmem:[%s3 + $0x80] sm:$0xff]
    %v58 = vld [vmem:[%s3 + $0x88] sm:$0xff]
    %v59 = vld [vmem:[%s3 + $0x90] sm:$0xff]
    %v60 = vld [vmem:[%s3 + $0x98] sm:$0xff]
    %v61 = vld [vmem:[%s3 + $0xa0] sm:$0xff]
    %v62 = vld [vmem:[%s3 + $0xa8] sm:$0xff]
    %v63 = vld [vmem:[%s3 + $0xb0] sm:$0xff]
    %v64 = vld [vmem:[%s3 + $0xb8] sm:$0xff]
    %v65 = vld [vmem:[%s3 + $0xc0] sm:$0xff]
    %v66 = vld [vmem:[%s3 + $0xc8] sm:$0xff]
    %v67 = vld [vmem:[%s3 + $0xd0] sm:$0xff]
    %v68 = vld [vmem:[%s3 + $0xd8] sm:$0xff]
    %v69 = vld [vmem:[%s3 + $0xe0] sm:$0xff]
    %v70 = vld [vmem:[%s3 + $0xe8] sm:$0xff]
    %v71 = vld [vmem:[%s3 + $0xf0] sm:$0xff]
    %v72 = vld [vmem:[%s3 + $0xf8] sm:$0xff]
    %v73 = vld [vmem:[%s3 + $0x100] sm:$0xff]
    %v74 = vld [vmem:[%s3 + $0x108] sm:$0xff]
    %v75 = vld [vmem:[%s3 + $0x110] sm:$0xff]
    %v76 = vld [vmem:[%s3 + $0x118] sm:$0xff]
    %v77 = vld [vmem:[%s3 + $0x120] sm:$0xff]
    %v78 = vld [vmem:[%s3 + $0x128] sm:$0xff]
    %v79 = vld [vmem:[%s3 + $0x130] sm:$0xff]
    %v80 = vld [vmem:[%s3 + $0x138] sm:$0xff]
    %v81 = vld [vmem:[%s3 + $0x140] sm:$0xff]
    %v82 = vld [vmem:[%s3 + $0x148] sm:$0xff]
    %v83 = vld [vmem:[%s3 + $0x150] sm:$0xff]
    %v84 = vld [vmem:[%s3 + $0x158] sm:$0xff]
    %v85 = vld [vmem:[%s3 + $0x160] sm:$0xff]
    %v86 = vld [vmem:[%s3 + $0x168] sm:$0xff]
    %v87 = vld [vmem:[%s3 + $0x170] sm:$0xff]
    %v88 = vld [vmem:[%s3 + $0x178] sm:$0xff]
    %v89 = vld [vmem:[%s3 + $0x180] sm:$0xff]
    %v90 = vld [vmem:[%s3 + $0x188] sm:$0xff]
    %v91 = vld [vmem:[%s3 + $0x190] sm:$0xff]
    %v92 = vld [vmem:[%s3 + $0x198] sm:$0xff]
    %v93 = vld [vmem:[%s3 + $0x1a0] sm:$0xff]
    %v94 = vld [vmem:[%s3 + $0x1a8] sm:$0xff]
    %v95 = vld [vmem:[%s3 + $0x1b0] sm:$0xff]
    %v96 = vld [vmem:[%s3 + $0x1b8] sm:$0xff]
    %v97 = vld [vmem:[%s3 + $0x1c0] sm:$0xff]
    %v98 = vld [vmem:[%s3 + $0x1c8] sm:$0xff]
    %v99 = vld [vmem:[%s3 + $0x1d0] sm:$0xff]
    %v100 = vld [vmem:[%s3 + $0x1d8] sm:$0xff]
    %v101 = vld [vmem:[%s3 + $0x1e0] sm:$0xff]
    %v102 = vld [vmem:[%s3 + $0x1e8] sm:$0xff]
    %v103 = vld [vmem:[%s3 + $0x1f0] sm:$0xff]
    %v104 = vld [vmem:[%s3 + $0x1f8] sm:$0xff]
    %v105 = vld [vmem:[#allocation2] sm:$0xff]
    %v106 = vld [vmem:[#allocation3] sm:$0xff]
    %v107 = vld [vmem:[%s2] sm:$0xff]
    %v108 = vld [vmem:[%s2 + $0x8] sm:$0xff]
    %v109 = vld [vmem:[%s2 + $0x10] sm:$0xff]
    %v110 = vld [vmem:[%s2 + $0x18] sm:$0xff]
    %111 = vmatprep.subr.mxu0 %v42
    %112 = vmatpush1.msra.mxu0 %v41
    %113 = vmatprep.subr.mxu0 %v46
    %114 = vmatpush1.msra.mxu0 %v45
    %115 = vmatprep.subr.mxu0 %v50
    %116 = vmatpush1.msra.mxu0 %v49
    %117 = vmatprep.subr.mxu0 %v54
    %118 = vmatpush1.msra.mxu0 %v53
    %119 = vmatprep.subr.mxu0 %v58
    %120 = vmatpush1.msra.mxu0 %v57
    %121 = vmatprep.subr.mxu0 %v62
    %122 = vmatpush1.msra.mxu0 %v61
    %123 = vmatprep.subr.mxu0 %v66
    %124 = vmatpush1.msra.mxu0 %v65
    %125 = vmatprep.subr.mxu0 %v70
    %126 = vmatpush1.msra.mxu0 %v69
    %127 = vmatprep.subr.mxu0 %v74
    %128 = vmatpush1.msra.mxu0 %v73
    %129 = vmatprep.subr.mxu0 %v78
    %130 = vmatpush1.msra.mxu0 %v77
    %131 = vmatprep.subr.mxu0 %v82
    %132 = vmatpush1.msra.mxu0 %v81
    %133 = vmatprep.subr.mxu0 %v86
    %134 = vmatpush1.msra.mxu0 %v85
    %135 = vmatprep.subr.mxu0 %v90
    %136 = vmatpush1.msra.mxu0 %v89
    %137 = vmatprep.subr.mxu0 %v94
    %138 = vmatpush1.msra.mxu0 %v93
    %139 = vmatprep.subr.mxu0 %v98
    %140 = vmatpush1.msra.mxu0 %v97
    %141 = vmatprep.subr.mxu0 %v102
    %142 = vmatpush1.msra.mxu0 %v101
    %143 = vmatprep.subr.mxu0 0.0
    %144 = vmatpush1.msra.mxu0 0.0
    %145 = vmatprep.subr.mxu0 0.0
    %146 = vmatpush1.msra.mxu0 0.0
    %147 = vmatprep.subr.mxu0 0.0
    %148 = vmatpush1.msra.mxu0 0.0
    %149 = vmatprep.subr.mxu0 0.0
    %150 = vmatpush1.msra.mxu0 0.0
    %151 = vmatprep.subr.mxu0 0.0
    %152 = vmatpush1.msra.mxu0 0.0
    %153 = vmatprep.subr.mxu0 0.0
    %154 = vmatpush1.msra.mxu0 0.0
    %155 = vmatprep.subr.mxu0 0.0
    %156 = vmatpush1.msra.mxu0 0.0
    %157 = vmatprep.subr.mxu0 0.0
    %158 = vmatpush1.msra.mxu0 0.0
    %159 = vmatprep.subr.mxu0 0.0
    %160 = vmatpush1.msra.mxu0 0.0
    %161 = vmatprep.subr.mxu0 0.0
    %162 = vmatpush1.msra.mxu0 0.0
    %163 = vmatprep.subr.mxu0 0.0
    %164 = vmatpush1.msra.mxu0 0.0
    %165 = vmatprep.subr.mxu0 0.0
    %166 = vmatpush1.msra.mxu0 0.0
    %167 = vmatprep.subr.mxu0 0.0
    %168 = vmatpush1.msra.mxu0 0.0
    %169 = vmatprep.subr.mxu0 0.0
    %170 = vmatpush1.msra.mxu0 0.0
    %171 = vmatprep.subr.mxu0 0.0
    %172 = vmatpush1.msra.mxu0 0.0
    %173 = vmatprep.subr.mxu0 0.0
    %174 = vmatpush1.msra.mxu0 0.0
    %175 = vmatprep.mubr.f32.mxu0 0.0
    %176 = vmatmul.mubr.f32.gmra.mrb[0].mxu0 %v105
    %v177 = vpop.f32.mrb[0].mxu0
    %v178 = vadd.f32 0.0, %v177
    %v179 = vpop.f32.mrb[0].mxu0
    %v180 = vadd.f32 0.0, %v179
    %181 = vdwg.mxu0
    %182 = vmatprep.subr.mxu0 %v44
    %183 = vmatpush1.msra.mxu0 %v43
    %184 = vmatprep.subr.mxu0 %v48
    %185 = vmatpush1.msra.mxu0 %v47
    %186 = vmatprep.subr.mxu0 %v52
    %187 = vmatpush1.msra.mxu0 %v51
    %188 = vmatprep.subr.mxu0 %v56
    %189 = vmatpush1.msra.mxu0 %v55
    %190 = vmatprep.subr.mxu0 %v60
    %191 = vmatpush1.msra.mxu0 %v59
    %192 = vmatprep.subr.mxu0 %v64
    %193 = vmatpush1.msra.mxu0 %v63
    %194 = vmatprep.subr.mxu0 %v68
    %195 = vmatpush1.msra.mxu0 %v67
    %196 = vmatprep.subr.mxu0 %v72
    %197 = vmatpush1.msra.mxu0 %v71
    %198 = vmatprep.subr.mxu0 %v76
    %199 = vmatpush1.msra.mxu0 %v75
    %200 = vmatprep.subr.mxu0 %v80
    %201 = vmatpush1.msra.mxu0 %v79
    %202 = vmatprep.subr.mxu0 %v84
    %203 = vmatpush1.msra.mxu0 %v83
    %204 = vmatprep.subr.mxu0 %v88
    %205 = vmatpush1.msra.mxu0 %v87
    %206 = vmatprep.subr.mxu0 %v92
    %207 = vmatpush1.msra.mxu0 %v91
    %208 = vmatprep.subr.mxu0 %v96
    %209 = vmatpush1.msra.mxu0 %v95
    %210 = vmatprep.subr.mxu0 %v100
    %211 = vmatpush1.msra.mxu0 %v99
    %212 = vmatprep.subr.mxu0 %v104
    %213 = vmatpush1.msra.mxu0 %v103
    %214 = vmatprep.subr.mxu0 0.0
    %215 = vmatpush1.msra.mxu0 0.0
    %216 = vmatprep.subr.mxu0 0.0
    %217 = vmatpush1.msra.mxu0 0.0
    %218 = vmatprep.subr.mxu0 0.0
    %219 = vmatpush1.msra.mxu0 0.0
    %220 = vmatprep.subr.mxu0 0.0
    %221 = vmatpush1.msra.mxu0 0.0
    %222 = vmatprep.subr.mxu0 0.0
    %223 = vmatpush1.msra.mxu0 0.0
    %224 = vmatprep.subr.mxu0 0.0
    %225 = vmatpush1.msra.mxu0 0.0
    %226 = vmatprep.subr.mxu0 0.0
    %227 = vmatpush1.msra.mxu0 0.0
    %228 = vmatprep.subr.mxu0 0.0
    %229 = vmatpush1.msra.mxu0 0.0
    %230 = vmatprep.subr.mxu0 0.0
    %231 = vmatpush1.msra.mxu0 0.0
    %232 = vmatprep.subr.mxu0 0.0
    %233 = vmatpush1.msra.mxu0 0.0
    %234 = vmatprep.subr.mxu0 0.0
    %235 = vmatpush1.msra.mxu0 0.0
    %236 = vmatprep.subr.mxu0 0.0
    %237 = vmatpush1.msra.mxu0 0.0
    %238 = vmatprep.subr.mxu0 0.0
    %239 = vmatpush1.msra.mxu0 0.0
    %240 = vmatprep.subr.mxu0 0.0
    %241 = vmatpush1.msra.mxu0 0.0
    %242 = vmatprep.subr.mxu0 0.0
    %243 = vmatpush1.msra.mxu0 0.0
    %244 = vmatprep.subr.mxu0 0.0
    %245 = vmatpush1.msra.mxu0 0.0
    %246 = vmatprep.mubr.f32.mxu0 0.0
    %247 = vmatmul.mubr.f32.gmra.mrb[0].mxu0 %v105
    %v248 = vpop.f32.mrb[0].mxu0
    %v249 = vadd.f32 0.0, %v248
    %v250 = vpop.f32.mrb[0].mxu0
    %v251 = vadd.f32 0.0, %v250
    %252 = vdwg.mxu0
    %v253 = vadd.f32 %v107, %v178
    %v254 = vadd.f32 %v108, %v180
    %v255 = vadd.f32 %v109, %v249
    %v256 = vadd.f32 %v110, %v251
    %v257 = vxor.u32 %v253, 2147483648
    %v258 = vxor.u32 %v254, 2147483648
    %v259 = vxor.u32 %v255, 2147483648
    %v260 = vmul.f32 %v257, 1.442695
    %v261 = vpow.pop %v260
    %v262 = vmul.f32 %v258, 1.442695
    %v263 = vpow.pop %v262
    %v264 = vmul.f32 %v259, 1.442695
    %v265 = vpow.pop %v264
    %v266 = vadd.f32 %v261, 1.0
    %v267 = vadd.f32 %v263, 1.0
    %v268 = vadd.f32 %v265, 1.0
    %v269 = vrcp.pop %v266
    %v270 = vmul.f32 1.0, %v269
    %v271 = vrcp.pop %v267
    %v272 = vmul.f32 1.0, %v271
    %v273 = vrcp.pop %v268
    %v274 = vmul.f32 1.0, %v273
    %v275 = vtanh.pop %v256
    %v276 = vmul.f32 %v272, %v106
    %v277 = vmul.f32 %v270, %v275
    %v278 = vadd.f32 %v276, %v277
    %v279 = vtanh.pop %v278
    %v280 = vmul.f32 %v274, %v279
    %v281 = vstv %s16
    %vm282 = vcmp.gt.s32.totalorder %v40, %v281
    %v283 = vsel %vm282, 1, 0
    %284 = vset.pattern.permute.xlu0 0
    %285 = vperm.xlu0 %284, %v283
    %v286 = vpop.permute.xlu0 %285
    %vm287 = vcmp.eq.s32.totalorder %v286, 1
    %v288 = vsel %vm287, %v280, %v105
    %v289 = vsel %vm287, %v278, %v106
    %v290 = vsel %vm287, %v280, 0.0
    %291 = vst [vmem:[%s4] sm:$0xff] %v290
    %s292 = scalar_lea.vmem %s2, 32
    %v293 = vld [vmem:[%s292] sm:$0xff]
    %v294 = vld [vmem:[%s292 + $0x8] sm:$0xff]
    %v295 = vld [vmem:[%s292 + $0x10] sm:$0xff]
    %v296 = vld [vmem:[%s292 + $0x18] sm:$0xff]
    %297 = vmatprep.subr.mxu0 %v42
    %298 = vmatpush1.msra.mxu0 %v41
    %299 = vmatprep.subr.mxu0 %v46
    %300 = vmatpush1.msra.mxu0 %v45
    %301 = vmatprep.subr.mxu0 %v50
    %302 = vmatpush1.msra.mxu0 %v49
    %303 = vmatprep.subr.mxu0 %v54
    %304 = vmatpush1.msra.mxu0 %v53
    %305 = vmatprep.subr.mxu0 %v58
    %306 = vmatpush1.msra.mxu0 %v57
    %307 = vmatprep.subr.mxu0 %v62
    %308 = vmatpush1.msra.mxu0 %v61
    %309 = vmatprep.subr.mxu0 %v66
    %310 = vmatpush1.msra.mxu0 %v65
    %311 = vmatprep.subr.mxu0 %v70
    %312 = vmatpush1.msra.mxu0 %v69
    %313 = vmatprep.subr.mxu0 %v74
    %314 = vmatpush1.msra.mxu0 %v73
    %315 = vmatprep.subr.mxu0 %v78
    %316 = vmatpush1.msra.mxu0 %v77
    %317 = vmatprep.subr.mxu0 %v82
    %318 = vmatpush1.msra.mxu0 %v81
    %319 = vmatprep.subr.mxu0 %v86
    %320 = vmatpush1.msra.mxu0 %v85
    %321 = vmatprep.subr.mxu0 %v90
    %322 = vmatpush1.msra.mxu0 %v89
    %323 = vmatprep.subr.mxu0 %v94
    %324 = vmatpush1.msra.mxu0 %v93
    %325 = vmatprep.subr.mxu0 %v98
    %326 = vmatpush1.msra.mxu0 %v97
    %327 = vmatprep.subr.mxu0 %v102
    %328 = vmatpush1.msra.mxu0 %v101
    %329 = vmatprep.subr.mxu0 0.0
    %330 = vmatpush1.msra.mxu0 0.0
    %331 = vmatprep.subr.mxu0 0.0
    %332 = vmatpush1.msra.mxu0 0.0
    %333 = vmatprep.subr.mxu0 0.0
    %334 = vmatpush1.msra.mxu0 0.0
    %335 = vmatprep.subr.mxu0 0.0
    %336 = vmatpush1.msra.mxu0 0.0
    %337 = vmatprep.subr.mxu0 0.0
    %338 = vmatpush1.msra.mxu0 0.0
    %339 = vmatprep.subr.mxu0 0.0
    %340 = vmatpush1.msra.mxu0 0.0
    %341 = vmatprep.subr.mxu0 0.0
    %342 = vmatpush1.msra.mxu0 0.0
    %343 = vmatprep.subr.mxu0 0.0
    %344 = vmatpush1.msra.mxu0 0.0
    %345 = vmatprep.subr.mxu0 0.0
    %346 = vmatpush1.msra.mxu0 0.0
    %347 = vmatprep.subr.mxu0 0.0
    %348 = vmatpush1.msra.mxu0 0.0
    %349 = vmatprep.subr.mxu0 0.0
    %350 = vmatpush1.msra.mxu0 0.0
    %351 = vmatprep.subr.mxu0 0.0
    %352 = vmatpush1.msra.mxu0 0.0
    %353 = vmatprep.subr.mxu0 0.0
    %354 = vmatpush1.msra.mxu0 0.0
    %355 = vmatprep.subr.mxu0 0.0
    %356 = vmatpush1.msra.mxu0 0.0
    %357 = vmatprep.subr.mxu0 0.0
    %358 = vmatpush1.msra.mxu0 0.0
    %359 = vmatprep.subr.mxu0 0.0
    %360 = vmatpush1.msra.mxu0 0.0
    %361 = vmatprep.mubr.f32.mxu0 0.0
    %362 = vmatmul.mubr.f32.gmra.mrb[0].mxu0 %v288
    %v363 = vpop.f32.mrb[0].mxu0
    %v364 = vadd.f32 0.0, %v363
    %v365 = vpop.f32.mrb[0].mxu0
    %v366 = vadd.f32 0.0, %v365
    %367 = vdwg.mxu0
    %368 = vmatprep.subr.mxu0 %v44
    %369 = vmatpush1.msra.mxu0 %v43
    %370 = vmatprep.subr.mxu0 %v48
    %371 = vmatpush1.msra.mxu0 %v47
    %372 = vmatprep.subr.mxu0 %v52
    %373 = vmatpush1.msra.mxu0 %v51
    %374 = vmatprep.subr.mxu0 %v56
    %375 = vmatpush1.msra.mxu0 %v55
    %376 = vmatprep.subr.mxu0 %v60
    %377 = vmatpush1.msra.mxu0 %v59
    %378 = vmatprep.subr.mxu0 %v64
    %379 = vmatpush1.msra.mxu0 %v63
    %380 = vmatprep.subr.mxu0 %v68
    %381 = vmatpush1.msra.mxu0 %v67
    %382 = vmatprep.subr.mxu0 %v72
    %383 = vmatpush1.msra.mxu0 %v71
    %384 = vmatprep.subr.mxu0 %v76
    %385 = vmatpush1.msra.mxu0 %v75
    %386 = vmatprep.subr.mxu0 %v80
    %387 = vmatpush1.msra.mxu0 %v79
    %388 = vmatprep.subr.mxu0 %v84
    %389 = vmatpush1.msra.mxu0 %v83
    %390 = vmatprep.subr.mxu0 %v88
    %391 = vmatpush1.msra.mxu0 %v87
    %392 = vmatprep.subr.mxu0 %v92
    %393 = vmatpush1.msra.mxu0 %v91
    %394 = vmatprep.subr.mxu0 %v96
    %395 = vmatpush1.msra.mxu0 %v95
    %396 = vmatprep.subr.mxu0 %v100
    %397 = vmatpush1.msra.mxu0 %v99
    %398 = vmatprep.subr.mxu0 %v104
    %399 = vmatpush1.msra.mxu0 %v103
    %400 = vmatprep.subr.mxu0 0.0
    %401 = vmatpush1.msra.mxu0 0.0
    %402 = vmatprep.subr.mxu0 0.0
    %403 = vmatpush1.msra.mxu0 0.0
    %404 = vmatprep.subr.mxu0 0.0
    %405 = vmatpush1.msra.mxu0 0.0
    %406 = vmatprep.subr.mxu0 0.0
    %407 = vmatpush1.msra.mxu0 0.0
    %408 = vmatprep.subr.mxu0 0.0
    %409 = vmatpush1.msra.mxu0 0.0
    %410 = vmatprep.subr.mxu0 0.0
    %411 = vmatpush1.msra.mxu0 0.0
    %412 = vmatprep.subr.mxu0 0.0
    %413 = vmatpush1.msra.mxu0 0.0
    %414 = vmatprep.subr.mxu0 0.0
    %415 = vmatpush1.msra.mxu0 0.0
    %416 = vmatprep.subr.mxu0 0.0
    %417 = vmatpush1.msra.mxu0 0.0
    %418 = vmatprep.subr.mxu0 0.0
    %419 = vmatpush1.msra.mxu0 0.0
    %420 = vmatprep.subr.mxu0 0.0
    %421 = vmatpush1.msra.mxu0 0.0
    %422 = vmatprep.subr.mxu0 0.0
    %423 = vmatpush1.msra.mxu0 0.0
    %424 = vmatprep.subr.mxu0 0.0
    %425 = vmatpush1.msra.mxu0 0.0
    %426 = vmatprep.subr.mxu0 0.0
    %427 = vmatpush1.msra.mxu0 0.0
    %428 = vmatprep.subr.mxu0 0.0
    %429 = vmatpush1.msra.mxu0 0.0
    %430 = vmatprep.subr.mxu0 0.0
    %431 = vmatpush1.msra.mxu0 0.0
    %432 = vmatprep.mubr.f32.mxu0 0.0
    %433 = vmatmul.mubr.f32.gmra.mrb[0].mxu0 %v288
    %v434 = vpop.f32.mrb[0].mxu0
    %v435 = vadd.f32 0.0, %v434
    %v436 = vpop.f32.mrb[0].mxu0
    %v437 = vadd.f32 0.0, %v436
    %438 = vdwg.mxu0
    %v439 = vadd.f32 %v293, %v364
    %v440 = vadd.f32 %v294, %v366
    %v441 = vadd.f32 %v295, %v435
    %v442 = vadd.f32 %v296, %v437
    %v443 = vxor.u32 %v439, 2147483648
    %v444 = vxor.u32 %v440, 2147483648
    %v445 = vxor.u32 %v441, 2147483648
    %v446 = vmul.f32 %v443, 1.442695
    %v447 = vpow.pop %v446
    %v448 = vmul.f32 %v444, 1.442695
    %v449 = vpow.pop %v448
    %v450 = vmul.f32 %v445, 1.442695
    %v451 = vpow.pop %v450
    %v452 = vadd.f32 %v447, 1.0
    %v453 = vadd.f32 %v449, 1.0
    %v454 = vadd.f32 %v451, 1.0
    %v455 = vrcp.pop %v452
    %v456 = vmul.f32 1.0, %v455
    %v457 = vrcp.pop %v453
    %v458 = vmul.f32 1.0, %v457
    %v459 = vrcp.pop %v454
    %v460 = vmul.f32 1.0, %v459
    %v461 = vtanh.pop %v442
    %v462 = vmul.f32 %v458, %v289
    %v463 = vmul.f32 %v456, %v461
    %v464 = vadd.f32 %v462, %v463
    %v465 = vtanh.pop %v464
    %v466 = vmul.f32 %v460, %v465
    %s467 = sadd.s32 %s16, 1
    %v468 = vstv %s467
    %vm469 = vcmp.gt.s32.totalorder %v40, %v468
    %v470 = vsel %vm469, 1, 0
    %471 = vset.pattern.permute.xlu0 0
    %472 = vperm.xlu0 %471, %v470
    %v473 = vpop.permute.xlu0 %472
    %vm474 = vcmp.eq.s32.totalorder %v473, 1
    %v475 = vsel %vm474, %v466, %v288
    %v476 = vsel %vm474, %v464, %v289
    %v477 = vsel %vm474, %v466, 0.0
    %s478 = scalar_lea.vmem %s4, 8
    %479 = vst [vmem:[%s478] sm:$0xff] %v477
    %s480 = scalar_lea.vmem %s2, 64
    %v481 = vld [vmem:[%s480] sm:$0xff]
    %v482 = vld [vmem:[%s480 + $0x8] sm:$0xff]
    %v483 = vld [vmem:[%s480 + $0x10] sm:$0xff]
    %v484 = vld [vmem:[%s480 + $0x18] sm:$0xff]
    %485 = vmatprep.subr.mxu0 %v42
    %486 = vmatpush1.msra.mxu0 %v41
    %487 = vmatprep.subr.mxu0 %v46
    %488 = vmatpush1.msra.mxu0 %v45
    %489 = vmatprep.subr.mxu0 %v50
    %490 = vmatpush1.msra.mxu0 %v49
    %491 = vmatprep.subr.mxu0 %v54
    %492 = vmatpush1.msra.mxu0 %v53
    %493 = vmatprep.subr.mxu0 %v58
    %494 = vmatpush1.msra.mxu0 %v57
    %495 = vmatprep.subr.mxu0 %v62
    %496 = vmatpush1.msra.mxu0 %v61
    %497 = vmatprep.subr.mxu0 %v66
    %498 = vmatpush1.msra.mxu0 %v65
    %499 = vmatprep.subr.mxu0 %v70
    %500 = vmatpush1.msra.mxu0 %v69
    %501 = vmatprep.subr.mxu0 %v74
    %502 = vmatpush1.msra.mxu0 %v73
    %503 = vmatprep.subr.mxu0 %v78
    %504 = vmatpush1.msra.mxu0 %v77
    %505 = vmatprep.subr.mxu0 %v82
    %506 = vmatpush1.msra.mxu0 %v81
    %507 = vmatprep.subr.mxu0 %v86
    %508 = vmatpush1.msra.mxu0 %v85
    %509 = vmatprep.subr.mxu0 %v90
    %510 = vmatpush1.msra.mxu0 %v89
    %511 = vmatprep.subr.mxu0 %v94
    %512 = vmatpush1.msra.mxu0 %v93
    %513 = vmatprep.subr.mxu0 %v98
    %514 = vmatpush1.msra.mxu0 %v97
    %515 = vmatprep.subr.mxu0 %v102
    %516 = vmatpush1.msra.mxu0 %v101
    %517 = vmatprep.subr.mxu0 0.0
    %518 = vmatpush1.msra.mxu0 0.0
    %519 = vmatprep.subr.mxu0 0.0
    %520 = vmatpush1.msra.mxu0 0.0
    %521 = vmatprep.subr.mxu0 0.0
    %522 = vmatpush1.msra.mxu0 0.0
    %523 = vmatprep.subr.mxu0 0.0
    %524 = vmatpush1.msra.mxu0 0.0
    %525 = vmatprep.subr.mxu0 0.0
    %526 = vmatpush1.msra.mxu0 0.0
    %527 = vmatprep.subr.mxu0 0.0
    %528 = vmatpush1.msra.mxu0 0.0
    %529 = vmatprep.subr.mxu0 0.0
    %530 = vmatpush1.msra.mxu0 0.0
    %531 = vmatprep.subr.mxu0 0.0
    %532 = vmatpush1.msra.mxu0 0.0
    %533 = vmatprep.subr.mxu0 0.0
    %534 = vmatpush1.msra.mxu0 0.0
    %535 = vmatprep.subr.mxu0 0.0
    %536 = vmatpush1.msra.mxu0 0.0
    %537 = vmatprep.subr.mxu0 0.0
    %538 = vmatpush1.msra.mxu0 0.0
    %539 = vmatprep.subr.mxu0 0.0
    %540 = vmatpush1.msra.mxu0 0.0
    %541 = vmatprep.subr.mxu0 0.0
    %542 = vmatpush1.msra.mxu0 0.0
    %543 = vmatprep.subr.mxu0 0.0
    %544 = vmatpush1.msra.mxu0 0.0
    %545 = vmatprep.subr.mxu0 0.0
    %546 = vmatpush1.msra.mxu0 0.0
    %547 = vmatprep.subr.mxu0 0.0
    %548 = vmatpush1.msra.mxu0 0.0
    %549 = vmatprep.mubr.f32.mxu0 0.0
    %550 = vmatmul.mubr.f32.gmra.mrb[0].mxu0 %v475
    %v551 = vpop.f32.mrb[0].mxu0
    %v552 = vadd.f32 0.0, %v551
    %v553 = vpop.f32.mrb[0].mxu0
    %v554 = vadd.f32 0.0, %v553
    %555 = vdwg.mxu0
    %556 = vmatprep.subr.mxu0 %v44
    %557 = vmatpush1.msra.mxu0 %v43
    %558 = vmatprep.subr.mxu0 %v48
    %559 = vmatpush1.msra.mxu0 %v47
    %560 = vmatprep.subr.mxu0 %v52
    %561 = vmatpush1.msra.mxu0 %v51
    %562 = vmatprep.subr.mxu0 %v56
    %563 = vmatpush1.msra.mxu0 %v55
    %564 = vmatprep.subr.mxu0 %v60
    %565 = vmatpush1.msra.mxu0 %v59
    %566 = vmatprep.subr.mxu0 %v64
    %567 = vmatpush1.msra.mxu0 %v63
    %568 = vmatprep.subr.mxu0 %v68
    %569 = vmatpush1.msra.mxu0 %v67
    %570 = vmatprep.subr.mxu0 %v72
    %571 = vmatpush1.msra.mxu0 %v71
    %572 = vmatprep.subr.mxu0 %v76
    %573 = vmatpush1.msra.mxu0 %v75
    %574 = vmatprep.subr.mxu0 %v80
    %575 = vmatpush1.msra.mxu0 %v79
    %576 = vmatprep.subr.mxu0 %v84
    %577 = vmatpush1.msra.mxu0 %v83
    %578 = vmatprep.subr.mxu0 %v88
    %579 = vmatpush1.msra.mxu0 %v87
    %580 = vmatprep.subr.mxu0 %v92
    %581 = vmatpush1.msra.mxu0 %v91
    %582 = vmatprep.subr.mxu0 %v96
    %583 = vmatpush1.msra.mxu0 %v95
    %584 = vmatprep.subr.mxu0 %v100
    %585 = vmatpush1.msra.mxu0 %v99
    %586 = vmatprep.subr.mxu0 %v104
    %587 = vmatpush1.msra.mxu0 %v103
    %588 = vmatprep.subr.mxu0 0.0
    %589 = vmatpush1.msra.mxu0 0.0
    %590 = vmatprep.subr.mxu0 0.0
    %591 = vmatpush1.msra.mxu0 0.0
    %592 = vmatprep.subr.mxu0 0.0
    %593 = vmatpush1.msra.mxu0 0.0
    %594 = vmatprep.subr.mxu0 0.0
    %595 = vmatpush1.msra.mxu0 0.0
    %596 = vmatprep.subr.mxu0 0.0
    %597 = vmatpush1.msra.mxu0 0.0
    %598 = vmatprep.subr.mxu0 0.0
    %599 = vmatpush1.msra.mxu0 0.0
    %600 = vmatprep.subr.mxu0 0.0
    %601 = vmatpush1.msra.mxu0 0.0
    %602 = vmatprep.subr.mxu0 0.0
    %603 = vmatpush1.msra.mxu0 0.0
    %604 = vmatprep.subr.mxu0 0.0
    %605 = vmatpush1.msra.mxu0 0.0
    %606 = vmatprep.subr.mxu0 0.0
    %607 = vmatpush1.msra.mxu0 0.0
    %608 = vmatprep.subr.mxu0 0.0
    %609 = vmatpush1.msra.mxu0 0.0
    %610 = vmatprep.subr.mxu0 0.0
    %611 = vmatpush1.msra.mxu0 0.0
    %612 = vmatprep.subr.mxu0 0.0
    %613 = vmatpush1.msra.mxu0 0.0
    %614 = vmatprep.subr.mxu0 0.0
    %615 = vmatpush1.msra.mxu0 0.0
    %616 = vmatprep.subr.mxu0 0.0
    %617 = vmatpush1.msra.mxu0 0.0
    %618 = vmatprep.subr.mxu0 0.0
    %619 = vmatpush1.msra.mxu0 0.0
    %620 = vmatprep.mubr.f32.mxu0 0.0
    %621 = vmatmul.mubr.f32.gmra.mrb[0].mxu0 %v475
    %v622 = vpop.f32.mrb[0].mxu0
    %v623 = vadd.f32 0.0, %v622
    %v624 = vpop.f32.mrb[0].mxu0
    %v625 = vadd.f32 0.0, %v624
    %626 = vdwg.mxu0
    %v627 = vadd.f32 %v481, %v552
    %v628 = vadd.f32 %v482, %v554
    %v629 = vadd.f32 %v483, %v623
    %v630 = vadd.f32 %v484, %v625
    %v631 = vxor.u32 %v627, 2147483648
    %v632 = vxor.u32 %v628, 2147483648
    %v633 = vxor.u32 %v629, 2147483648
    %v634 = vmul.f32 %v631, 1.442695
    %v635 = vpow.pop %v634
    %v636 = vmul.f32 %v632, 1.442695
    %v637 = vpow.pop %v636
    %v638 = vmul.f32 %v633, 1.442695
    %v639 = vpow.pop %v638
    %v640 = vadd.f32 %v635, 1.0
    %v641 = vadd.f32 %v637, 1.0
    %v642 = vadd.f32 %v639, 1.0
    %v643 = vrcp.pop %v640
    %v644 = vmul.f32 1.0, %v643
    %v645 = vrcp.pop %v641
    %v646 = vmul.f32 1.0, %v645
    %v647 = vrcp.pop %v642
    %v648 = vmul.f32 1.0, %v647
    %v649 = vtanh.pop %v630
    %v650 = vmul.f32 %v646, %v476
    %v651 = vmul.f32 %v644, %v649
    %v652 = vadd.f32 %v650, %v651
    %v653 = vtanh.pop %v652
    %v654 = vmul.f32 %v648, %v653
    %s655 = sadd.s32 %s16, 2
    %v656 = vstv %s655
    %vm657 = vcmp.gt.s32.totalorder %v40, %v656
    %v658 = vsel %vm657, 1, 0
    %659 = vset.pattern.permute.xlu0 0
    %660 = vperm.xlu0 %659, %v658
    %v661 = vpop.permute.xlu0 %660
    %vm662 = vcmp.eq.s32.totalorder %v661, 1
    %v663 = vsel %vm662, %v654, %v475
    %v664 = vsel %vm662, %v652, %v476
    %v665 = vsel %vm662, %v654, 0.0
    %s666 = scalar_lea.vmem %s4, 16
    %667 = vst [vmem:[%s666] sm:$0xff] %v665
    %s668 = scalar_lea.vmem %s2, 96
    %v669 = vld [vmem:[%s668] sm:$0xff]
    %v670 = vld [vmem:[%s668 + $0x8] sm:$0xff]
    %v671 = vld [vmem:[%s668 + $0x10] sm:$0xff]
    %v672 = vld [vmem:[%s668 + $0x18] sm:$0xff]
    %673 = vmatprep.subr.mxu0 %v42
    %674 = vmatpush1.msra.mxu0 %v41
    %675 = vmatprep.subr.mxu0 %v46
    %676 = vmatpush1.msra.mxu0 %v45
    %677 = vmatprep.subr.mxu0 %v50
    %678 = vmatpush1.msra.mxu0 %v49
    %679 = vmatprep.subr.mxu0 %v54
    %680 = vmatpush1.msra.mxu0 %v53
    %681 = vmatprep.subr.mxu0 %v58
    %682 = vmatpush1.msra.mxu0 %v57
    %683 = vmatprep.subr.mxu0 %v62
    %684 = vmatpush1.msra.mxu0 %v61
    %685 = vmatprep.subr.mxu0 %v66
    %686 = vmatpush1.msra.mxu0 %v65
    %687 = vmatprep.subr.mxu0 %v70
    %688 = vmatpush1.msra.mxu0 %v69
    %689 = vmatprep.subr.mxu0 %v74
    %690 = vmatpush1.msra.mxu0 %v73
    %691 = vmatprep.subr.mxu0 %v78
    %692 = vmatpush1.msra.mxu0 %v77
    %693 = vmatprep.subr.mxu0 %v82
    %694 = vmatpush1.msra.mxu0 %v81
    %695 = vmatprep.subr.mxu0 %v86
    %696 = vmatpush1.msra.mxu0 %v85
    %697 = vmatprep.subr.mxu0 %v90
    %698 = vmatpush1.msra.mxu0 %v89
    %699 = vmatprep.subr.mxu0 %v94
    %700 = vmatpush1.msra.mxu0 %v93
    %701 = vmatprep.subr.mxu0 %v98
    %702 = vmatpush1.msra.mxu0 %v97
    %703 = vmatprep.subr.mxu0 %v102
    %704 = vmatpush1.msra.mxu0 %v101
    %705 = vmatprep.subr.mxu0 0.0
    %706 = vmatpush1.msra.mxu0 0.0
    %707 = vmatprep.subr.mxu0 0.0
    %708 = vmatpush1.msra.mxu0 0.0
    %709 = vmatprep.subr.mxu0 0.0
    %710 = vmatpush1.msra.mxu0 0.0
    %711 = vmatprep.subr.mxu0 0.0
    %712 = vmatpush1.msra.mxu0 0.0
    %713 = vmatprep.subr.mxu0 0.0
    %714 = vmatpush1.msra.mxu0 0.0
    %715 = vmatprep.subr.mxu0 0.0
    %716 = vmatpush1.msra.mxu0 0.0
    %717 = vmatprep.subr.mxu0 0.0
    %718 = vmatpush1.msra.mxu0 0.0
    %719 = vmatprep.subr.mxu0 0.0
    %720 = vmatpush1.msra.mxu0 0.0
    %721 = vmatprep.subr.mxu0 0.0
    %722 = vmatpush1.msra.mxu0 0.0
    %723 = vmatprep.subr.mxu0 0.0
    %724 = vmatpush1.msra.mxu0 0.0
    %725 = vmatprep.subr.mxu0 0.0
    %726 = vmatpush1.msra.mxu0 0.0
    %727 = vmatprep.subr.mxu0 0.0
    %728 = vmatpush1.msra.mxu0 0.0
    %729 = vmatprep.subr.mxu0 0.0
    %730 = vmatpush1.msra.mxu0 0.0
    %731 = vmatprep.subr.mxu0 0.0
    %732 = vmatpush1.msra.mxu0 0.0
    %733 = vmatprep.subr.mxu0 0.0
    %734 = vmatpush1.msra.mxu0 0.0
    %735 = vmatprep.subr.mxu0 0.0
    %736 = vmatpush1.msra.mxu0 0.0
    %737 = vmatprep.mubr.f32.mxu0 0.0
    %738 = vmatmul.mubr.f32.gmra.mrb[0].mxu0 %v663
    %v739 = vpop.f32.mrb[0].mxu0
    %v740 = vadd.f32 0.0, %v739
    %v741 = vpop.f32.mrb[0].mxu0
    %v742 = vadd.f32 0.0, %v741
    %743 = vdwg.mxu0
    %744 = vmatprep.subr.mxu0 %v44
    %745 = vmatpush1.msra.mxu0 %v43
    %746 = vmatprep.subr.mxu0 %v48
    %747 = vmatpush1.msra.mxu0 %v47
    %748 = vmatprep.subr.mxu0 %v52
    %749 = vmatpush1.msra.mxu0 %v51
    %750 = vmatprep.subr.mxu0 %v56
    %751 = vmatpush1.msra.mxu0 %v55
    %752 = vmatprep.subr.mxu0 %v60
    %753 = vmatpush1.msra.mxu0 %v59
    %754 = vmatprep.subr.mxu0 %v64
    %755 = vmatpush1.msra.mxu0 %v63
    %756 = vmatprep.subr.mxu0 %v68
    %757 = vmatpush1.msra.mxu0 %v67
    %758 = vmatprep.subr.mxu0 %v72
    %759 = vmatpush1.msra.mxu0 %v71
    %760 = vmatprep.subr.mxu0 %v76
    %761 = vmatpush1.msra.mxu0 %v75
    %762 = vmatprep.subr.mxu0 %v80
    %763 = vmatpush1.msra.mxu0 %v79
    %764 = vmatprep.subr.mxu0 %v84
    %765 = vmatpush1.msra.mxu0 %v83
    %766 = vmatprep.subr.mxu0 %v88
    %767 = vmatpush1.msra.mxu0 %v87
    %768 = vmatprep.subr.mxu0 %v92
    %769 = vmatpush1.msra.mxu0 %v91
    %770 = vmatprep.subr.mxu0 %v96
    %771 = vmatpush1.msra.mxu0 %v95
    %772 = vmatprep.subr.mxu0 %v100
    %773 = vmatpush1.msra.mxu0 %v99
    %774 = vmatprep.subr.mxu0 %v104
    %775 = vmatpush1.msra.mxu0 %v103
    %776 = vmatprep.subr.mxu0 0.0
    %777 = vmatpush1.msra.mxu0 0.0
    %778 = vmatprep.subr.mxu0 0.0
    %779 = vmatpush1.msra.mxu0 0.0
    %780 = vmatprep.subr.mxu0 0.0
    %781 = vmatpush1.msra.mxu0 0.0
    %782 = vmatprep.subr.mxu0 0.0
    %783 = vmatpush1.msra.mxu0 0.0
    %784 = vmatprep.subr.mxu0 0.0
    %785 = vmatpush1.msra.mxu0 0.0
    %786 = vmatprep.subr.mxu0 0.0
    %787 = vmatpush1.msra.mxu0 0.0
    %788 = vmatprep.subr.mxu0 0.0
    %789 = vmatpush1.msra.mxu0 0.0
    %790 = vmatprep.subr.mxu0 0.0
    %791 = vmatpush1.msra.mxu0 0.0
    %792 = vmatprep.subr.mxu0 0.0
    %793 = vmatpush1.msra.mxu0 0.0
    %794 = vmatprep.subr.mxu0 0.0
    %795 = vmatpush1.msra.mxu0 0.0
    %796 = vmatprep.subr.mxu0 0.0
    %797 = vmatpush1.msra.mxu0 0.0
    %798 = vmatprep.subr.mxu0 0.0
    %799 = vmatpush1.msra.mxu0 0.0
    %800 = vmatprep.subr.mxu0 0.0
    %801 = vmatpush1.msra.mxu0 0.0
    %802 = vmatprep.subr.mxu0 0.0
    %803 = vmatpush1.msra.mxu0 0.0
    %804 = vmatprep.subr.mxu0 0.0
    %805 = vmatpush1.msra.mxu0 0.0
    %806 = vmatprep.subr.mxu0 0.0
    %807 = vmatpush1.msra.mxu0 0.0
    %808 = vmatprep.mubr.f32.mxu0 0.0
    %809 = vmatmul.mubr.f32.gmra.mrb[0].mxu0 %v663
    %v810 = vpop.f32.mrb[0].mxu0
    %v811 = vadd.f32 0.0, %v810
    %v812 = vpop.f32.mrb[0].mxu0
    %v813 = vadd.f32 0.0, %v812
    %814 = vdwg.mxu0
    %v815 = vadd.f32 %v669, %v740
    %v816 = vadd.f32 %v670, %v742
    %v817 = vadd.f32 %v671, %v811
    %v818 = vadd.f32 %v672, %v813
    %v819 = vxor.u32 %v815, 2147483648
    %v820 = vxor.u32 %v816, 2147483648
    %v821 = vxor.u32 %v817, 2147483648
    %v822 = vmul.f32 %v819, 1.442695
    %v823 = vpow.pop %v822
    %v824 = vmul.f32 %v820, 1.442695
    %v825 = vpow.pop %v824
    %v826 = vmul.f32 %v821, 1.442695
    %v827 = vpow.pop %v826
    %v828 = vadd.f32 %v823, 1.0
    %v829 = vadd.f32 %v825, 1.0
    %v830 = vadd.f32 %v827, 1.0
    %v831 = vrcp.pop %v828
    %v832 = vmul.f32 1.0, %v831
    %v833 = vrcp.pop %v829
    %v834 = vmul.f32 1.0, %v833
    %v835 = vrcp.pop %v830
    %v836 = vmul.f32 1.0, %v835
    %v837 = vtanh.pop %v818
    %v838 = vmul.f32 %v834, %v664
    %v839 = vmul.f32 %v832, %v837
    %v840 = vadd.f32 %v838, %v839
    %v841 = vtanh.pop %v840
    %v842 = vmul.f32 %v836, %v841
    %s843 = sadd.s32 %s16, 3
    %v844 = vstv %s843
    %vm845 = vcmp.gt.s32.totalorder %v40, %v844
    %v846 = vsel %vm845, 1, 0
    %847 = vset.pattern.permute.xlu0 0
    %848 = vperm.xlu0 %847, %v846
    %v849 = vpop.permute.xlu0 %848
    %vm850 = vcmp.eq.s32.totalorder %v849, 1
    %v851 = vsel %vm850, %v842, %v663
    %v852 = vsel %vm850, %v840, %v664
    %v853 = vsel %vm850, %v842, 0.0
    %s854 = scalar_lea.vmem %s4, 24
    %855 = vst [vmem:[%s854] sm:$0xff] %v853
    %s856 = scalar_lea.vmem %s2, 128
    %v857 = vld [vmem:[%s856] sm:$0xff]
    %v858 = vld [vmem:[%s856 + $0x8] sm:$0xff]
    %v859 = vld [vmem:[%s856 + $0x10] sm:$0xff]
    %v860 = vld [vmem:[%s856 + $0x18] sm:$0xff]
    %861 = vmatprep.subr.mxu0 %v42
    %862 = vmatpush1.msra.mxu0 %v41
    %863 = vmatprep.subr.mxu0 %v46
    %864 = vmatpush1.msra.mxu0 %v45
    %865 = vmatprep.subr.mxu0 %v50
    %866 = vmatpush1.msra.mxu0 %v49
    %867 = vmatprep.subr.mxu0 %v54
    %868 = vmatpush1.msra.mxu0 %v53
    %869 = vmatprep.subr.mxu0 %v58
    %870 = vmatpush1.msra.mxu0 %v57
    %871 = vmatprep.subr.mxu0 %v62
    %872 = vmatpush1.msra.mxu0 %v61
    %873 = vmatprep.subr.mxu0 %v66
    %874 = vmatpush1.msra.mxu0 %v65
    %875 = vmatprep.subr.mxu0 %v70
    %876 = vmatpush1.msra.mxu0 %v69
    %877 = vmatprep.subr.mxu0 %v74
    %878 = vmatpush1.msra.mxu0 %v73
    %879 = vmatprep.subr.mxu0 %v78
    %880 = vmatpush1.msra.mxu0 %v77
    %881 = vmatprep.subr.mxu0 %v82
    %882 = vmatpush1.msra.mxu0 %v81
    %883 = vmatprep.subr.mxu0 %v86
    %884 = vmatpush1.msra.mxu0 %v85
    %885 = vmatprep.subr.mxu0 %v90
    %886 = vmatpush1.msra.mxu0 %v89
    %887 = vmatprep.subr.mxu0 %v94
    %888 = vmatpush1.msra.mxu0 %v93
    %889 = vmatprep.subr.mxu0 %v98
    %890 = vmatpush1.msra.mxu0 %v97
    %891 = vmatprep.subr.mxu0 %v102
    %892 = vmatpush1.msra.mxu0 %v101
    %893 = vmatprep.subr.mxu0 0.0
    %894 = vmatpush1.msra.mxu0 0.0
    %895 = vmatprep.subr.mxu0 0.0
    %896 = vmatpush1.msra.mxu0 0.0
    %897 = vmatprep.subr.mxu0 0.0
    %898 = vmatpush1.msra.mxu0 0.0
    %899 = vmatprep.subr.mxu0 0.0
    %900 = vmatpush1.msra.mxu0 0.0
    %901 = vmatprep.subr.mxu0 0.0
    %902 = vmatpush1.msra.mxu0 0.0
    %903 = vmatprep.subr.mxu0 0.0
    %904 = vmatpush1.msra.mxu0 0.0
    %905 = vmatprep.subr.mxu0 0.0
    %906 = vmatpush1.msra.mxu0 0.0
    %907 = vmatprep.subr.mxu0 0.0
    %908 = vmatpush1.msra.mxu0 0.0
    %909 = vmatprep.subr.mxu0 0.0
    %910 = vmatpush1.msra.mxu0 0.0
    %911 = vmatprep.subr.mxu0 0.0
    %912 = vmatpush1.msra.mxu0 0.0
    %913 = vmatprep.subr.mxu0 0.0
    %914 = vmatpush1.msra.mxu0 0.0
    %915 = vmatprep.subr.mxu0 0.0
    %916 = vmatpush1.msra.mxu0 0.0
    %917 = vmatprep.subr.mxu0 0.0
    %918 = vmatpush1.msra.mxu0 0.0
    %919 = vmatprep.subr.mxu0 0.0
    %920 = vmatpush1.msra.mxu0 0.0
    %921 = vmatprep.subr.mxu0 0.0
    %922 = vmatpush1.msra.mxu0 0.0
    %923 = vmatprep.subr.mxu0 0.0
    %924 = vmatpush1.msra.mxu0 0.0
    %925 = vmatprep.mubr.f32.mxu0 0.0
    %926 = vmatmul.mubr.f32.gmra.mrb[0].mxu0 %v851
    %v927 = vpop.f32.mrb[0].mxu0
    %v928 = vadd.f32 0.0, %v927
    %v929 = vpop.f32.mrb[0].mxu0
    %v930 = vadd.f32 0.0, %v929
    %931 = vdwg.mxu0
    %932 = vmatprep.subr.mxu0 %v44
    %933 = vmatpush1.msra.mxu0 %v43
    %934 = vmatprep.subr.mxu0 %v48
    %935 = vmatpush1.msra.mxu0 %v47
    %936 = vmatprep.subr.mxu0 %v52
    %937 = vmatpush1.msra.mxu0 %v51
    %938 = vmatprep.subr.mxu0 %v56
    %939 = vmatpush1.msra.mxu0 %v55
    %940 = vmatprep.subr.mxu0 %v60
    %941 = vmatpush1.msra.mxu0 %v59
    %942 = vmatprep.subr.mxu0 %v64
    %943 = vmatpush1.msra.mxu0 %v63
    %944 = vmatprep.subr.mxu0 %v68
    %945 = vmatpush1.msra.mxu0 %v67
    %946 = vmatprep.subr.mxu0 %v72
    %947 = vmatpush1.msra.mxu0 %v71
    %948 = vmatprep.subr.mxu0 %v76
    %949 = vmatpush1.msra.mxu0 %v75
    %950 = vmatprep.subr.mxu0 %v80
    %951 = vmatpush1.msra.mxu0 %v79
    %952 = vmatprep.subr.mxu0 %v84
    %953 = vmatpush1.msra.mxu0 %v83
    %954 = vmatprep.subr.mxu0 %v88
    %955 = vmatpush1.msra.mxu0 %v87
    %956 = vmatprep.subr.mxu0 %v92
    %957 = vmatpush1.msra.mxu0 %v91
    %958 = vmatprep.subr.mxu0 %v96
    %959 = vmatpush1.msra.mxu0 %v95
    %960 = vmatprep.subr.mxu0 %v100
    %961 = vmatpush1.msra.mxu0 %v99
    %962 = vmatprep.subr.mxu0 %v104
    %963 = vmatpush1.msra.mxu0 %v103
    %964 = vmatprep.subr.mxu0 0.0
    %965 = vmatpush1.msra.mxu0 0.0
    %966 = vmatprep.subr.mxu0 0.0
    %967 = vmatpush1.msra.mxu0 0.0
    %968 = vmatprep.subr.mxu0 0.0
    %969 = vmatpush1.msra.mxu0 0.0
    %970 = vmatprep.subr.mxu0 0.0
    %971 = vmatpush1.msra.mxu0 0.0
    %972 = vmatprep.subr.mxu0 0.0
    %973 = vmatpush1.msra.mxu0 0.0
    %974 = vmatprep.subr.mxu0 0.0
    %975 = vmatpush1.msra.mxu0 0.0
    %976 = vmatprep.subr.mxu0 0.0
    %977 = vmatpush1.msra.mxu0 0.0
    %978 = vmatprep.subr.mxu0 0.0
    %979 = vmatpush1.msra.mxu0 0.0
    %980 = vmatprep.subr.mxu0 0.0
    %981 = vmatpush1.msra.mxu0 0.0
    %982 = vmatprep.subr.mxu0 0.0
    %983 = vmatpush1.msra.mxu0 0.0
    %984 = vmatprep.subr.mxu0 0.0
    %985 = vmatpush1.msra.mxu0 0.0
    %986 = vmatprep.subr.mxu0 0.0
    %987 = vmatpush1.msra.mxu0 0.0
    %988 = vmatprep.subr.mxu0 0.0
    %989 = vmatpush1.msra.mxu0 0.0
    %990 = vmatprep.subr.mxu0 0.0
    %991 = vmatpush1.msra.mxu0 0.0
    %992 = vmatprep.subr.mxu0 0.0
    %993 = vmatpush1.msra.mxu0 0.0
    %994 = vmatprep.subr.mxu0 0.0
    %995 = vmatpush1.msra.mxu0 0.0
    %996 = vmatprep.mubr.f32.mxu0 0.0
    %997 = vmatmul.mubr.f32.gmra.mrb[0].mxu0 %v851
    %v998 = vpop.f32.mrb[0].mxu0
    %v999 = vadd.f32 0.0, %v998
    %v1000 = vpop.f32.mrb[0].mxu0
    %v1001 = vadd.f32 0.0, %v1000
    %1002 = vdwg.mxu0
    %v1003 = vadd.f32 %v857, %v928
    %v1004 = vadd.f32 %v858, %v930
    %v1005 = vadd.f32 %v859, %v999
    %v1006 = vadd.f32 %v860, %v1001
    %v1007 = vxor.u32 %v1003, 2147483648
    %v1008 = vxor.u32 %v1004, 2147483648
    %v1009 = vxor.u32 %v1005, 2147483648
    %v1010 = vmul.f32 %v1007, 1.442695
    %v1011 = vpow.pop %v1010
    %v1012 = vmul.f32 %v1008, 1.442695
    %v1013 = vpow.pop %v1012
    %v1014 = vmul.f32 %v1009, 1.442695
    %v1015 = vpow.pop %v1014
    %v1016 = vadd.f32 %v1011, 1.0
    %v1017 = vadd.f32 %v1013, 1.0
    %v1018 = vadd.f32 %v1015, 1.0
    %v1019 = vrcp.pop %v1016
    %v1020 = vmul.f32 1.0, %v1019
    %v1021 = vrcp.pop %v1017
    %v1022 = vmul.f32 1.0, %v1021
    %v1023 = vrcp.pop %v1018
    %v1024 = vmul.f32 1.0, %v1023
    %v1025 = vtanh.pop %v1006
    %v1026 = vmul.f32 %v1022, %v852
    %v1027 = vmul.f32 %v1020, %v1025
    %v1028 = vadd.f32 %v1026, %v1027
    %v1029 = vtanh.pop %v1028
    %v1030 = vmul.f32 %v1024, %v1029
    %s1031 = sadd.s32 %s16, 4
    %v1032 = vstv %s1031
    %vm1033 = vcmp.gt.s32.totalorder %v40, %v1032
    %v1034 = vsel %vm1033, 1, 0
    %1035 = vset.pattern.permute.xlu0 0
    %1036 = vperm.xlu0 %1035, %v1034
    %v1037 = vpop.permute.xlu0 %1036
    %vm1038 = vcmp.eq.s32.totalorder %v1037, 1
    %v1039 = vsel %vm1038, %v1030, %v851
    %v1040 = vsel %vm1038, %v1028, %v852
    %v1041 = vsel %vm1038, %v1030, 0.0
    %s1042 = scalar_lea.vmem %s4, 32
    %1043 = vst [vmem:[%s1042] sm:$0xff] %v1041
    %s1044 = scalar_lea.vmem %s2, 160
    %v1045 = vld [vmem:[%s1044] sm:$0xff]
    %v1046 = vld [vmem:[%s1044 + $0x8] sm:$0xff]
    %v1047 = vld [vmem:[%s1044 + $0x10] sm:$0xff]
    %v1048 = vld [vmem:[%s1044 + $0x18] sm:$0xff]
    %1049 = vmatprep.subr.mxu0 %v42
    %1050 = vmatpush1.msra.mxu0 %v41
    %1051 = vmatprep.subr.mxu0 %v46
    %1052 = vmatpush1.msra.mxu0 %v45
    %1053 = vmatprep.subr.mxu0 %v50
    %1054 = vmatpush1.msra.mxu0 %v49
    %1055 = vmatprep.subr.mxu0 %v54
    %1056 = vmatpush1.msra.mxu0 %v53
    %1057 = vmatprep.subr.mxu0 %v58
    %1058 = vmatpush1.msra.mxu0 %v57
    %1059 = vmatprep.subr.mxu0 %v62
    %1060 = vmatpush1.msra.mxu0 %v61
    %1061 = vmatprep.subr.mxu0 %v66
    %1062 = vmatpush1.msra.mxu0 %v65
    %1063 = vmatprep.subr.mxu0 %v70
    %1064 = vmatpush1.msra.mxu0 %v69
    %1065 = vmatprep.subr.mxu0 %v74
    %1066 = vmatpush1.msra.mxu0 %v73
    %1067 = vmatprep.subr.mxu0 %v78
    %1068 = vmatpush1.msra.mxu0 %v77
    %1069 = vmatprep.subr.mxu0 %v82
    %1070 = vmatpush1.msra.mxu0 %v81
    %1071 = vmatprep.subr.mxu0 %v86
    %1072 = vmatpush1.msra.mxu0 %v85
    %1073 = vmatprep.subr.mxu0 %v90
    %1074 = vmatpush1.msra.mxu0 %v89
    %1075 = vmatprep.subr.mxu0 %v94
    %1076 = vmatpush1.msra.mxu0 %v93
    %1077 = vmatprep.subr.mxu0 %v98
    %1078 = vmatpush1.msra.mxu0 %v97
    %1079 = vmatprep.subr.mxu0 %v102
    %1080 = vmatpush1.msra.mxu0 %v101
    %1081 = vmatprep.subr.mxu0 0.0
    %1082 = vmatpush1.msra.mxu0 0.0
    %1083 = vmatprep.subr.mxu0 0.0
    %1084 = vmatpush1.msra.mxu0 0.0
    %1085 = vmatprep.subr.mxu0 0.0
    %1086 = vmatpush1.msra.mxu0 0.0
    %1087 = vmatprep.subr.mxu0 0.0
    %1088 = vmatpush1.msra.mxu0 0.0
    %1089 = vmatprep.subr.mxu0 0.0
    %1090 = vmatpush1.msra.mxu0 0.0
    %1091 = vmatprep.subr.mxu0 0.0
    %1092 = vmatpush1.msra.mxu0 0.0
    %1093 = vmatprep.subr.mxu0 0.0
    %1094 = vmatpush1.msra.mxu0 0.0
    %1095 = vmatprep.subr.mxu0 0.0
    %1096 = vmatpush1.msra.mxu0 0.0
    %1097 = vmatprep.subr.mxu0 0.0
    %1098 = vmatpush1.msra.mxu0 0.0
    %1099 = vmatprep.subr.mxu0 0.0
    %1100 = vmatpush1.msra.mxu0 0.0
    %1101 = vmatprep.subr.mxu0 0.0
    %1102 = vmatpush1.msra.mxu0 0.0
    %1103 = vmatprep.subr.mxu0 0.0
    %1104 = vmatpush1.msra.mxu0 0.0
    %1105 = vmatprep.subr.mxu0 0.0
    %1106 = vmatpush1.msra.mxu0 0.0
    %1107 = vmatprep.subr.mxu0 0.0
    %1108 = vmatpush1.msra.mxu0 0.0
    %1109 = vmatprep.subr.mxu0 0.0
    %1110 = vmatpush1.msra.mxu0 0.0
    %1111 = vmatprep.subr.mxu0 0.0
    %1112 = vmatpush1.msra.mxu0 0.0
    %1113 = vmatprep.mubr.f32.mxu0 0.0
    %1114 = vmatmul.mubr.f32.gmra.mrb[0].mxu0 %v1039
    %v1115 = vpop.f32.mrb[0].mxu0
    %v1116 = vadd.f32 0.0, %v1115
    %v1117 = vpop.f32.mrb[0].mxu0
    %v1118 = vadd.f32 0.0, %v1117
    %1119 = vdwg.mxu0
    %1120 = vmatprep.subr.mxu0 %v44
    %1121 = vmatpush1.msra.mxu0 %v43
    %1122 = vmatprep.subr.mxu0 %v48
    %1123 = vmatpush1.msra.mxu0 %v47
    %1124 = vmatprep.subr.mxu0 %v52
    %1125 = vmatpush1.msra.mxu0 %v51
    %1126 = vmatprep.subr.mxu0 %v56
    %1127 = vmatpush1.msra.mxu0 %v55
    %1128 = vmatprep.subr.mxu0 %v60
    %1129 = vmatpush1.msra.mxu0 %v59
    %1130 = vmatprep.subr.mxu0 %v64
    %1131 = vmatpush1.msra.mxu0 %v63
    %1132 = vmatprep.subr.mxu0 %v68
    %1133 = vmatpush1.msra.mxu0 %v67
    %1134 = vmatprep.subr.mxu0 %v72
    %1135 = vmatpush1.msra.mxu0 %v71
    %1136 = vmatprep.subr.mxu0 %v76
    %1137 = vmatpush1.msra.mxu0 %v75
    %1138 = vmatprep.subr.mxu0 %v80
    %1139 = vmatpush1.msra.mxu0 %v79
    %1140 = vmatprep.subr.mxu0 %v84
    %1141 = vmatpush1.msra.mxu0 %v83
    %1142 = vmatprep.subr.mxu0 %v88
    %1143 = vmatpush1.msra.mxu0 %v87
    %1144 = vmatprep.subr.mxu0 %v92
    %1145 = vmatpush1.msra.mxu0 %v91
    %1146 = vmatprep.subr.mxu0 %v96
    %1147 = vmatpush1.msra.mxu0 %v95
    %1148 = vmatprep.subr.mxu0 %v100
    %1149 = vmatpush1.msra.mxu0 %v99
    %1150 = vmatprep.subr.mxu0 %v104
    %1151 = vmatpush1.msra.mxu0 %v103
    %1152 = vmatprep.subr.mxu0 0.0
    %1153 = vmatpush1.msra.mxu0 0.0
    %1154 = vmatprep.subr.mxu0 0.0
    %1155 = vmatpush1.msra.mxu0 0.0
    %1156 = vmatprep.subr.mxu0 0.0
    %1157 = vmatpush1.msra.mxu0 0.0
    %1158 = vmatprep.subr.mxu0 0.0
    %1159 = vmatpush1.msra.mxu0 0.0
    %1160 = vmatprep.subr.mxu0 0.0
    %1161 = vmatpush1.msra.mxu0 0.0
    %1162 = vmatprep.subr.mxu0 0.0
    %1163 = vmatpush1.msra.mxu0 0.0
    %1164 = vmatprep.subr.mxu0 0.0
    %1165 = vmatpush1.msra.mxu0 0.0
    %1166 = vmatprep.subr.mxu0 0.0
    %1167 = vmatpush1.msra.mxu0 0.0
    %1168 = vmatprep.subr.mxu0 0.0
    %1169 = vmatpush1.msra.mxu0 0.0
    %1170 = vmatprep.subr.mxu0 0.0
    %1171 = vmatpush1.msra.mxu0 0.0
    %1172 = vmatprep.subr.mxu0 0.0
    %1173 = vmatpush1.msra.mxu0 0.0
    %1174 = vmatprep.subr.mxu0 0.0
    %1175 = vmatpush1.msra.mxu0 0.0
    %1176 = vmatprep.subr.mxu0 0.0
    %1177 = vmatpush1.msra.mxu0 0.0
    %1178 = vmatprep.subr.mxu0 0.0
    %1179 = vmatpush1.msra.mxu0 0.0
    %1180 = vmatprep.subr.mxu0 0.0
    %1181 = vmatpush1.msra.mxu0 0.0
    %1182 = vmatprep.subr.mxu0 0.0
    %1183 = vmatpush1.msra.mxu0 0.0
    %1184 = vmatprep.mubr.f32.mxu0 0.0
    %1185 = vmatmul.mubr.f32.gmra.mrb[0].mxu0 %v1039
    %v1186 = vpop.f32.mrb[0].mxu0
    %v1187 = vadd.f32 0.0, %v1186
    %v1188 = vpop.f32.mrb[0].mxu0
    %v1189 = vadd.f32 0.0, %v1188
    %1190 = vdwg.mxu0
    %v1191 = vadd.f32 %v1045, %v1116
    %v1192 = vadd.f32 %v1046, %v1118
    %v1193 = vadd.f32 %v1047, %v1187
    %v1194 = vadd.f32 %v1048, %v1189
    %v1195 = vxor.u32 %v1191, 2147483648
    %v1196 = vxor.u32 %v1192, 2147483648
    %v1197 = vxor.u32 %v1193, 2147483648
    %v1198 = vmul.f32 %v1195, 1.442695
    %v1199 = vpow.pop %v1198
    %v1200 = vmul.f32 %v1196, 1.442695
    %v1201 = vpow.pop %v1200
    %v1202 = vmul.f32 %v1197, 1.442695
    %v1203 = vpow.pop %v1202
    %v1204 = vadd.f32 %v1199, 1.0
    %v1205 = vadd.f32 %v1201, 1.0
    %v1206 = vadd.f32 %v1203, 1.0
    %v1207 = vrcp.pop %v1204
    %v1208 = vmul.f32 1.0, %v1207
    %v1209 = vrcp.pop %v1205
    %v1210 = vmul.f32 1.0, %v1209
    %v1211 = vrcp.pop %v1206
    %v1212 = vmul.f32 1.0, %v1211
    %v1213 = vtanh.pop %v1194
    %v1214 = vmul.f32 %v1210, %v1040
    %v1215 = vmul.f32 %v1208, %v1213
    %v1216 = vadd.f32 %v1214, %v1215
    %v1217 = vtanh.pop %v1216
    %v1218 = vmul.f32 %v1212, %v1217
    %s1219 = sadd.s32 %s16, 5
    %v1220 = vstv %s1219
    %vm1221 = vcmp.gt.s32.totalorder %v40, %v1220
    %v1222 = vsel %vm1221, 1, 0
    %1223 = vset.pattern.permute.xlu0 0
    %1224 = vperm.xlu0 %1223, %v1222
    %v1225 = vpop.permute.xlu0 %1224
    %vm1226 = vcmp.eq.s32.totalorder %v1225, 1
    %v1227 = vsel %vm1226, %v1218, %v1039
    %v1228 = vsel %vm1226, %v1216, %v1040
    %v1229 = vsel %vm1226, %v1218, 0.0
    %s1230 = scalar_lea.vmem %s4, 40
    %1231 = vst [vmem:[%s1230] sm:$0xff] %v1229
    %s1232 = scalar_lea.vmem %s2, 192
    %v1233 = vld [vmem:[%s1232] sm:$0xff]
    %v1234 = vld [vmem:[%s1232 + $0x8] sm:$0xff]
    %v1235 = vld [vmem:[%s1232 + $0x10] sm:$0xff]
    %v1236 = vld [vmem:[%s1232 + $0x18] sm:$0xff]
    %1237 = vmatprep.subr.mxu0 %v42
    %1238 = vmatpush1.msra.mxu0 %v41
    %1239 = vmatprep.subr.mxu0 %v46
    %1240 = vmatpush1.msra.mxu0 %v45
    %1241 = vmatprep.subr.mxu0 %v50
    %1242 = vmatpush1.msra.mxu0 %v49
    %1243 = vmatprep.subr.mxu0 %v54
    %1244 = vmatpush1.msra.mxu0 %v53
    %1245 = vmatprep.subr.mxu0 %v58
    %1246 = vmatpush1.msra.mxu0 %v57
    %1247 = vmatprep.subr.mxu0 %v62
    %1248 = vmatpush1.msra.mxu0 %v61
    %1249 = vmatprep.subr.mxu0 %v66
    %1250 = vmatpush1.msra.mxu0 %v65
    %1251 = vmatprep.subr.mxu0 %v70
    %1252 = vmatpush1.msra.mxu0 %v69
    %1253 = vmatprep.subr.mxu0 %v74
    %1254 = vmatpush1.msra.mxu0 %v73
    %1255 = vmatprep.subr.mxu0 %v78
    %1256 = vmatpush1.msra.mxu0 %v77
    %1257 = vmatprep.subr.mxu0 %v82
    %1258 = vmatpush1.msra.mxu0 %v81
    %1259 = vmatprep.subr.mxu0 %v86
    %1260 = vmatpush1.msra.mxu0 %v85
    %1261 = vmatprep.subr.mxu0 %v90
    %1262 = vmatpush1.msra.mxu0 %v89
    %1263 = vmatprep.subr.mxu0 %v94
    %1264 = vmatpush1.msra.mxu0 %v93
    %1265 = vmatprep.subr.mxu0 %v98
    %1266 = vmatpush1.msra.mxu0 %v97
    %1267 = vmatprep.subr.mxu0 %v102
    %1268 = vmatpush1.msra.mxu0 %v101
    %1269 = vmatprep.subr.mxu0 0.0
    %1270 = vmatpush1.msra.mxu0 0.0
    %1271 = vmatprep.subr.mxu0 0.0
    %1272 = vmatpush1.msra.mxu0 0.0
    %1273 = vmatprep.subr.mxu0 0.0
    %1274 = vmatpush1.msra.mxu0 0.0
    %1275 = vmatprep.subr.mxu0 0.0
    %1276 = vmatpush1.msra.mxu0 0.0
    %1277 = vmatprep.subr.mxu0 0.0
    %1278 = vmatpush1.msra.mxu0 0.0
    %1279 = vmatprep.subr.mxu0 0.0
    %1280 = vmatpush1.msra.mxu0 0.0
    %1281 = vmatprep.subr.mxu0 0.0
    %1282 = vmatpush1.msra.mxu0 0.0
    %1283 = vmatprep.subr.mxu0 0.0
    %1284 = vmatpush1.msra.mxu0 0.0
    %1285 = vmatprep.subr.mxu0 0.0
    %1286 = vmatpush1.msra.mxu0 0.0
    %1287 = vmatprep.subr.mxu0 0.0
    %1288 = vmatpush1.msra.mxu0 0.0
    %1289 = vmatprep.subr.mxu0 0.0
    %1290 = vmatpush1.msra.mxu0 0.0
    %1291 = vmatprep.subr.mxu0 0.0
    %1292 = vmatpush1.msra.mxu0 0.0
    %1293 = vmatprep.subr.mxu0 0.0
    %1294 = vmatpush1.msra.mxu0 0.0
    %1295 = vmatprep.subr.mxu0 0.0
    %1296 = vmatpush1.msra.mxu0 0.0
    %1297 = vmatprep.subr.mxu0 0.0
    %1298 = vmatpush1.msra.mxu0 0.0
    %1299 = vmatprep.subr.mxu0 0.0
    %1300 = vmatpush1.msra.mxu0 0.0
    %1301 = vmatprep.mubr.f32.mxu0 0.0
    %1302 = vmatmul.mubr.f32.gmra.mrb[0].mxu0 %v1227
    %v1303 = vpop.f32.mrb[0].mxu0
    %v1304 = vadd.f32 0.0, %v1303
    %v1305 = vpop.f32.mrb[0].mxu0
    %v1306 = vadd.f32 0.0, %v1305
    %1307 = vdwg.mxu0
    %1308 = vmatprep.subr.mxu0 %v44
    %1309 = vmatpush1.msra.mxu0 %v43
    %1310 = vmatprep.subr.mxu0 %v48
    %1311 = vmatpush1.msra.mxu0 %v47
    %1312 = vmatprep.subr.mxu0 %v52
    %1313 = vmatpush1.msra.mxu0 %v51
    %1314 = vmatprep.subr.mxu0 %v56
    %1315 = vmatpush1.msra.mxu0 %v55
    %1316 = vmatprep.subr.mxu0 %v60
    %1317 = vmatpush1.msra.mxu0 %v59
    %1318 = vmatprep.subr.mxu0 %v64
    %1319 = vmatpush1.msra.mxu0 %v63
    %1320 = vmatprep.subr.mxu0 %v68
    %1321 = vmatpush1.msra.mxu0 %v67
    %1322 = vmatprep.subr.mxu0 %v72
    %1323 = vmatpush1.msra.mxu0 %v71
    %1324 = vmatprep.subr.mxu0 %v76
    %1325 = vmatpush1.msra.mxu0 %v75
    %1326 = vmatprep.subr.mxu0 %v80
    %1327 = vmatpush1.msra.mxu0 %v79
    %1328 = vmatprep.subr.mxu0 %v84
    %1329 = vmatpush1.msra.mxu0 %v83
    %1330 = vmatprep.subr.mxu0 %v88
    %1331 = vmatpush1.msra.mxu0 %v87
    %1332 = vmatprep.subr.mxu0 %v92
    %1333 = vmatpush1.msra.mxu0 %v91
    %1334 = vmatprep.subr.mxu0 %v96
    %1335 = vmatpush1.msra.mxu0 %v95
    %1336 = vmatprep.subr.mxu0 %v100
    %1337 = vmatpush1.msra.mxu0 %v99
    %1338 = vmatprep.subr.mxu0 %v104
    %1339 = vmatpush1.msra.mxu0 %v103
    %1340 = vmatprep.subr.mxu0 0.0
    %1341 = vmatpush1.msra.mxu0 0.0
    %1342 = vmatprep.subr.mxu0 0.0
    %1343 = vmatpush1.msra.mxu0 0.0
    %1344 = vmatprep.subr.mxu0 0.0
    %1345 = vmatpush1.msra.mxu0 0.0
    %1346 = vmatprep.subr.mxu0 0.0
    %1347 = vmatpush1.msra.mxu0 0.0
    %1348 = vmatprep.subr.mxu0 0.0
    %1349 = vmatpush1.msra.mxu0 0.0
    %1350 = vmatprep.subr.mxu0 0.0
    %1351 = vmatpush1.msra.mxu0 0.0
    %1352 = vmatprep.subr.mxu0 0.0
    %1353 = vmatpush1.msra.mxu0 0.0
    %1354 = vmatprep.subr.mxu0 0.0
    %1355 = vmatpush1.msra.mxu0 0.0
    %1356 = vmatprep.subr.mxu0 0.0
    %1357 = vmatpush1.msra.mxu0 0.0
    %1358 = vmatprep.subr.mxu0 0.0
    %1359 = vmatpush1.msra.mxu0 0.0
    %1360 = vmatprep.subr.mxu0 0.0
    %1361 = vmatpush1.msra.mxu0 0.0
    %1362 = vmatprep.subr.mxu0 0.0
    %1363 = vmatpush1.msra.mxu0 0.0
    %1364 = vmatprep.subr.mxu0 0.0
    %1365 = vmatpush1.msra.mxu0 0.0
    %1366 = vmatprep.subr.mxu0 0.0
    %1367 = vmatpush1.msra.mxu0 0.0
    %1368 = vmatprep.subr.mxu0 0.0
    %1369 = vmatpush1.msra.mxu0 0.0
    %1370 = vmatprep.subr.mxu0 0.0
    %1371 = vmatpush1.msra.mxu0 0.0
    %1372 = vmatprep.mubr.f32.mxu0 0.0
    %1373 = vmatmul.mubr.f32.gmra.mrb[0].mxu0 %v1227
    %v1374 = vpop.f32.mrb[0].mxu0
    %v1375 = vadd.f32 0.0, %v1374
    %v1376 = vpop.f32.mrb[0].mxu0
    %v1377 = vadd.f32 0.0, %v1376
    %1378 = vdwg.mxu0
    %v1379 = vadd.f32 %v1233, %v1304
    %v1380 = vadd.f32 %v1234, %v1306
    %v1381 = vadd.f32 %v1235, %v1375
    %v1382 = vadd.f32 %v1236, %v1377
    %v1383 = vxor.u32 %v1379, 2147483648
    %v1384 = vxor.u32 %v1380, 2147483648
    %v1385 = vxor.u32 %v1381, 2147483648
    %v1386 = vmul.f32 %v1383, 1.442695
    %v1387 = vpow.pop %v1386
    %v1388 = vmul.f32 %v1384, 1.442695
    %v1389 = vpow.pop %v1388
    %v1390 = vmul.f32 %v1385, 1.442695
    %v1391 = vpow.pop %v1390
    %v1392 = vadd.f32 %v1387, 1.0
    %v1393 = vadd.f32 %v1389, 1.0
    %v1394 = vadd.f32 %v1391, 1.0
    %v1395 = vrcp.pop %v1392
    %v1396 = vmul.f32 1.0, %v1395
    %v1397 = vrcp.pop %v1393
    %v1398 = vmul.f32 1.0, %v1397
    %v1399 = vrcp.pop %v1394
    %v1400 = vmul.f32 1.0, %v1399
    %v1401 = vtanh.pop %v1382
    %v1402 = vmul.f32 %v1398, %v1228
    %v1403 = vmul.f32 %v1396, %v1401
    %v1404 = vadd.f32 %v1402, %v1403
    %v1405 = vtanh.pop %v1404
    %v1406 = vmul.f32 %v1400, %v1405
    %s1407 = sadd.s32 %s16, 6
    %v1408 = vstv %s1407
    %vm1409 = vcmp.gt.s32.totalorder %v40, %v1408
    %v1410 = vsel %vm1409, 1, 0
    %1411 = vset.pattern.permute.xlu0 0
    %1412 = vperm.xlu0 %1411, %v1410
    %v1413 = vpop.permute.xlu0 %1412
    %vm1414 = vcmp.eq.s32.totalorder %v1413, 1
    %v1415 = vsel %vm1414, %v1406, %v1227
    %v1416 = vsel %vm1414, %v1404, %v1228
    %v1417 = vsel %vm1414, %v1406, 0.0
    %s1418 = scalar_lea.vmem %s4, 48
    %1419 = vst [vmem:[%s1418] sm:$0xff] %v1417
    %s1420 = scalar_lea.vmem %s2, 224
    %v1421 = vld [vmem:[%s1420] sm:$0xff]
    %v1422 = vld [vmem:[%s1420 + $0x8] sm:$0xff]
    %v1423 = vld [vmem:[%s1420 + $0x10] sm:$0xff]
    %v1424 = vld [vmem:[%s1420 + $0x18] sm:$0xff]
    %1425 = vmatprep.subr.mxu0 %v42
    %1426 = vmatpush1.msra.mxu0 %v41
    %1427 = vmatprep.subr.mxu0 %v46
    %1428 = vmatpush1.msra.mxu0 %v45
    %1429 = vmatprep.subr.mxu0 %v50
    %1430 = vmatpush1.msra.mxu0 %v49
    %1431 = vmatprep.subr.mxu0 %v54
    %1432 = vmatpush1.msra.mxu0 %v53
    %1433 = vmatprep.subr.mxu0 %v58
    %1434 = vmatpush1.msra.mxu0 %v57
    %1435 = vmatprep.subr.mxu0 %v62
    %1436 = vmatpush1.msra.mxu0 %v61
    %1437 = vmatprep.subr.mxu0 %v66
    %1438 = vmatpush1.msra.mxu0 %v65
    %1439 = vmatprep.subr.mxu0 %v70
    %1440 = vmatpush1.msra.mxu0 %v69
    %1441 = vmatprep.subr.mxu0 %v74
    %1442 = vmatpush1.msra.mxu0 %v73
    %1443 = vmatprep.subr.mxu0 %v78
    %1444 = vmatpush1.msra.mxu0 %v77
    %1445 = vmatprep.subr.mxu0 %v82
    %1446 = vmatpush1.msra.mxu0 %v81
    %1447 = vmatprep.subr.mxu0 %v86
    %1448 = vmatpush1.msra.mxu0 %v85
    %1449 = vmatprep.subr.mxu0 %v90
    %1450 = vmatpush1.msra.mxu0 %v89
    %1451 = vmatprep.subr.mxu0 %v94
    %1452 = vmatpush1.msra.mxu0 %v93
    %1453 = vmatprep.subr.mxu0 %v98
    %1454 = vmatpush1.msra.mxu0 %v97
    %1455 = vmatprep.subr.mxu0 %v102
    %1456 = vmatpush1.msra.mxu0 %v101
    %1457 = vmatprep.subr.mxu0 0.0
    %1458 = vmatpush1.msra.mxu0 0.0
    %1459 = vmatprep.subr.mxu0 0.0
    %1460 = vmatpush1.msra.mxu0 0.0
    %1461 = vmatprep.subr.mxu0 0.0
    %1462 = vmatpush1.msra.mxu0 0.0
    %1463 = vmatprep.subr.mxu0 0.0
    %1464 = vmatpush1.msra.mxu0 0.0
    %1465 = vmatprep.subr.mxu0 0.0
    %1466 = vmatpush1.msra.mxu0 0.0
    %1467 = vmatprep.subr.mxu0 0.0
    %1468 = vmatpush1.msra.mxu0 0.0
    %1469 = vmatprep.subr.mxu0 0.0
    %1470 = vmatpush1.msra.mxu0 0.0
    %1471 = vmatprep.subr.mxu0 0.0
    %1472 = vmatpush1.msra.mxu0 0.0
    %1473 = vmatprep.subr.mxu0 0.0
    %1474 = vmatpush1.msra.mxu0 0.0
    %1475 = vmatprep.subr.mxu0 0.0
    %1476 = vmatpush1.msra.mxu0 0.0
    %1477 = vmatprep.subr.mxu0 0.0
    %1478 = vmatpush1.msra.mxu0 0.0
    %1479 = vmatprep.subr.mxu0 0.0
    %1480 = vmatpush1.msra.mxu0 0.0
    %1481 = vmatprep.subr.mxu0 0.0
    %1482 = vmatpush1.msra.mxu0 0.0
    %1483 = vmatprep.subr.mxu0 0.0
    %1484 = vmatpush1.msra.mxu0 0.0
    %1485 = vmatprep.subr.mxu0 0.0
    %1486 = vmatpush1.msra.mxu0 0.0
    %1487 = vmatprep.subr.mxu0 0.0
    %1488 = vmatpush1.msra.mxu0 0.0
    %1489 = vmatprep.mubr.f32.mxu0 0.0
    %1490 = vmatmul.mubr.f32.gmra.mrb[0].mxu0 %v1415
    %v1491 = vpop.f32.mrb[0].mxu0
    %v1492 = vadd.f32 0.0, %v1491
    %v1493 = vpop.f32.mrb[0].mxu0
    %v1494 = vadd.f32 0.0, %v1493
    %1495 = vdwg.mxu0
    %1496 = vmatprep.subr.mxu0 %v44
    %1497 = vmatpush1.msra.mxu0 %v43
    %1498 = vmatprep.subr.mxu0 %v48
    %1499 = vmatpush1.msra.mxu0 %v47
    %1500 = vmatprep.subr.mxu0 %v52
    %1501 = vmatpush1.msra.mxu0 %v51
    %1502 = vmatprep.subr.mxu0 %v56
    %1503 = vmatpush1.msra.mxu0 %v55
    %1504 = vmatprep.subr.mxu0 %v60
    %1505 = vmatpush1.msra.mxu0 %v59
    %1506 = vmatprep.subr.mxu0 %v64
    %1507 = vmatpush1.msra.mxu0 %v63
    %1508 = vmatprep.subr.mxu0 %v68
    %1509 = vmatpush1.msra.mxu0 %v67
    %1510 = vmatprep.subr.mxu0 %v72
    %1511 = vmatpush1.msra.mxu0 %v71
    %1512 = vmatprep.subr.mxu0 %v76
    %1513 = vmatpush1.msra.mxu0 %v75
    %1514 = vmatprep.subr.mxu0 %v80
    %1515 = vmatpush1.msra.mxu0 %v79
    %1516 = vmatprep.subr.mxu0 %v84
    %1517 = vmatpush1.msra.mxu0 %v83
    %1518 = vmatprep.subr.mxu0 %v88
    %1519 = vmatpush1.msra.mxu0 %v87
    %1520 = vmatprep.subr.mxu0 %v92
    %1521 = vmatpush1.msra.mxu0 %v91
    %1522 = vmatprep.subr.mxu0 %v96
    %1523 = vmatpush1.msra.mxu0 %v95
    %1524 = vmatprep.subr.mxu0 %v100
    %1525 = vmatpush1.msra.mxu0 %v99
    %1526 = vmatprep.subr.mxu0 %v104
    %1527 = vmatpush1.msra.mxu0 %v103
    %1528 = vmatprep.subr.mxu0 0.0
    %1529 = vmatpush1.msra.mxu0 0.0
    %1530 = vmatprep.subr.mxu0 0.0
    %1531 = vmatpush1.msra.mxu0 0.0
    %1532 = vmatprep.subr.mxu0 0.0
    %1533 = vmatpush1.msra.mxu0 0.0
    %1534 = vmatprep.subr.mxu0 0.0
    %1535 = vmatpush1.msra.mxu0 0.0
    %1536 = vmatprep.subr.mxu0 0.0
    %1537 = vmatpush1.msra.mxu0 0.0
    %1538 = vmatprep.subr.mxu0 0.0
    %1539 = vmatpush1.msra.mxu0 0.0
    %1540 = vmatprep.subr.mxu0 0.0
    %1541 = vmatpush1.msra.mxu0 0.0
    %1542 = vmatprep.subr.mxu0 0.0
    %1543 = vmatpush1.msra.mxu0 0.0
    %1544 = vmatprep.subr.mxu0 0.0
    %1545 = vmatpush1.msra.mxu0 0.0
    %1546 = vmatprep.subr.mxu0 0.0
    %1547 = vmatpush1.msra.mxu0 0.0
    %1548 = vmatprep.subr.mxu0 0.0
    %1549 = vmatpush1.msra.mxu0 0.0
    %1550 = vmatprep.subr.mxu0 0.0
    %1551 = vmatpush1.msra.mxu0 0.0
    %1552 = vmatprep.subr.mxu0 0.0
    %1553 = vmatpush1.msra.mxu0 0.0
    %1554 = vmatprep.subr.mxu0 0.0
    %1555 = vmatpush1.msra.mxu0 0.0
    %1556 = vmatprep.subr.mxu0 0.0
    %1557 = vmatpush1.msra.mxu0 0.0
    %1558 = vmatprep.subr.mxu0 0.0
    %1559 = vmatpush1.msra.mxu0 0.0
    %1560 = vmatprep.mubr.f32.mxu0 0.0
    %1561 = vmatmul.mubr.f32.gmra.mrb[0].mxu0 %v1415
    %v1562 = vpop.f32.mrb[0].mxu0
    %v1563 = vadd.f32 0.0, %v1562
    %v1564 = vpop.f32.mrb[0].mxu0
    %v1565 = vadd.f32 0.0, %v1564
    %1566 = vdwg.mxu0
    %v1567 = vadd.f32 %v1421, %v1492
    %v1568 = vadd.f32 %v1422, %v1494
    %v1569 = vadd.f32 %v1423, %v1563
    %v1570 = vadd.f32 %v1424, %v1565
    %v1571 = vxor.u32 %v1567, 2147483648
    %v1572 = vxor.u32 %v1568, 2147483648
    %v1573 = vxor.u32 %v1569, 2147483648
    %v1574 = vmul.f32 %v1571, 1.442695
    %v1575 = vpow.pop %v1574
    %v1576 = vmul.f32 %v1572, 1.442695
    %v1577 = vpow.pop %v1576
    %v1578 = vmul.f32 %v1573, 1.442695
    %v1579 = vpow.pop %v1578
    %v1580 = vadd.f32 %v1575, 1.0
    %v1581 = vadd.f32 %v1577, 1.0
    %v1582 = vadd.f32 %v1579, 1.0
    %v1583 = vrcp.pop %v1580
    %v1584 = vmul.f32 1.0, %v1583
    %v1585 = vrcp.pop %v1581
    %v1586 = vmul.f32 1.0, %v1585
    %v1587 = vrcp.pop %v1582
    %v1588 = vmul.f32 1.0, %v1587
    %v1589 = vtanh.pop %v1570
    %v1590 = vmul.f32 %v1586, %v1416
    %v1591 = vmul.f32 %v1584, %v1589
    %v1592 = vadd.f32 %v1590, %v1591
    %v1593 = vtanh.pop %v1592
    %v1594 = vmul.f32 %v1588, %v1593
    %s1595 = sadd.s32 %s16, 7
    %v1596 = vstv %s1595
    %vm1597 = vcmp.gt.s32.totalorder %v40, %v1596
    %v1598 = vsel %vm1597, 1, 0
    %1599 = vset.pattern.permute.xlu0 0
    %1600 = vperm.xlu0 %1599, %v1598
    %v1601 = vpop.permute.xlu0 %1600
    %vm1602 = vcmp.eq.s32.totalorder %v1601, 1
    %v1603 = vsel %vm1602, %v1594, %v1415
    %v1604 = vsel %vm1602, %v1592, %v1416
    %v1605 = vsel %vm1602, %v1594, 0.0
    %s1606 = scalar_lea.vmem %s4, 56
    %1607 = vst [vmem:[%s1606] sm:$0xff] %v1605
    %1608 = vst [vmem:[#allocation2] sm:$0xff] %v1603
    %1609 = vst [vmem:[#allocation3] sm:$0xff] %v1604
  $region25: #{code_expression_tokens_sequence_encoder.1} parent=0 // pred_fallthru
    _
  // Predicated region
  $region26: #{code_expression_tokens_sequence_encoder.1} parent=0 // pred_check
    _
  $region27: #{code_expression_tokens_sequence_encoder.1} parent=0 // pred_check_branch
    %1611 = sbr.rel (0) target = $region29
  $region28: #{code_expression_tokens_sequence_encoder.1} parent=0 // pred_region
    _
  $region29: #{code_expression_tokens_sequence_encoder.1} parent=0 // pred_fallthru
    _
  // Predicated region
  $region30: #{code_expression_tokens_sequence_encoder.1} parent=0 // pred_check
    _
  $region31: #{code_expression_tokens_sequence_encoder.1} parent=0 // pred_check_branch
    %1613 = sbr.rel (0) target = $region33
  $region32: #{code_expression_tokens_sequence_encoder.1} parent=0 // pred_region
    _
  $region33: #{code_expression_tokens_sequence_encoder.1} parent=0 // pred_fallthru
    _

</llo_original>
